<compile_context>
chip_gen: v5e
topology: v5e:2x2
jax: 0.10.0
libtpu: 0.0.40
codegen_flags: <defaults>
</compile_context>

<pallas_src>
import math
from functools import partial

import jax
import jax.numpy as jnp
from jax.experimental import pallas as pl
from jax.experimental.pallas import tpu as pltpu


# ------------------------------ tiled linear ------------------------------
def _linear_kernel(x_ref, w_ref, b_ref, o_ref, acc_ref):
    k = pl.program_id(2)

    @pl.when(k == 0)
    def _init():
        acc_ref[...] = jnp.zeros_like(acc_ref)

    acc_ref[...] += jnp.dot(x_ref[...], w_ref[...], preferred_element_type=jnp.float32)

    @pl.when(k == pl.num_programs(2) - 1)
    def _finalize():
        o_ref[...] = (acc_ref[...] + b_ref[...].astype(jnp.float32)).astype(o_ref.dtype)


def linear(x2d, w, b, *, tm=256, tn=256, tk=512):
    """x2d: (M, K), w: (K, N), b: (N,) -> (M, N). Tiled MXU matmul with f32 accumulator."""
    M, K = x2d.shape
    K2, N = w.shape
    assert K == K2
    tm, tn, tk = min(tm, M), min(tn, N), min(tk, K)
    assert M % tm == 0 and N % tn == 0 and K % tk == 0
    return pl.pallas_call(
        _linear_kernel,
        out_shape=jax.ShapeDtypeStruct((M, N), x2d.dtype),
        grid=(M // tm, N // tn, K // tk),
        in_specs=[
            pl.BlockSpec((tm, tk), lambda i, j, k: (i, k)),
            pl.BlockSpec((tk, tn), lambda i, j, k: (k, j)),
            pl.BlockSpec((1, tn), lambda i, j, k: (0, j)),
        ],
        out_specs=pl.BlockSpec((tm, tn), lambda i, j, k: (i, j)),
        scratch_shapes=[pltpu.VMEM((tm, tn), jnp.float32)],
        compiler_params=pltpu.CompilerParams(
            dimension_semantics=("parallel", "parallel", "arbitrary")),
    )(x2d, w, b.reshape(1, N))


# --------------------------- flash attention kernel ---------------------------
def _flash_attn_kernel(q_ref, k_ref, v_ref, cq_ref, sq_ref, ck_ref, sk_ref,
                       o_ref, m_sc, l_sc, acc_sc,
                       *, groups, head_dim, scale, tq, tkv):
    qi = pl.program_id(2)
    kv = pl.program_id(3)
    half = head_dim // 2

    @pl.when(kv == 0)
    def _init():
        m_sc[...] = jnp.full_like(m_sc, -1e30)
        l_sc[...] = jnp.zeros_like(l_sc)
        acc_sc[...] = jnp.zeros_like(acc_sc)

    # Causal block skip: only kv tiles intersecting the causal region do any work.
    @pl.when(kv * tkv <= qi * tq + (tq - 1))
    def _compute():
        cos_q = cq_ref[...]
        sin_q = sq_ref[...]
        cos_k = ck_ref[...]
        sin_k = sk_ref[...]

        # K RoPE / casts done once and shared by all q-heads of this kv-head (GQA).
        k = k_ref[0].astype(jnp.float32)
        kr = (k * cos_k + pltpu.roll(k, half, 1) * sin_k).astype(jnp.bfloat16)
        v = v_ref[0].astype(jnp.bfloat16)

        row = qi * tq + jax.lax.broadcasted_iota(jnp.int32, (tq, tkv), 0)
        col = kv * tkv + jax.lax.broadcasted_iota(jnp.int32, (tq, tkv), 1)
        causal = col <= row

        for g in range(groups):
            # softmax scale folded into q (a (tq, D) mul instead of (tq, tkv)).
            q = q_ref[0, :, g * head_dim:(g + 1) * head_dim].astype(jnp.float32) * scale
            qr = (q * cos_q + pltpu.roll(q, half, 1) * sin_q).astype(jnp.bfloat16)

            s = jax.lax.dot_general(qr, kr, (((1,), (1,)), ((), ())),
                                    preferred_element_type=jnp.float32)
            s = jnp.where(causal, s, -1e30)

            m_prev = m_sc[g]
            m_new = jnp.maximum(m_prev, jnp.max(s, axis=-1, keepdims=True))
            alpha = jnp.exp(m_prev - m_new)
            p = jnp.exp(s - m_new)

            l_sc[g] = alpha * l_sc[g] + jnp.sum(p, axis=-1, keepdims=True)
            acc_sc[g] = alpha * acc_sc[g] + jnp.dot(
                p.astype(jnp.bfloat16), v, preferred_element_type=jnp.float32)
            m_sc[g] = m_new

    @pl.when(kv == pl.num_programs(3) - 1)
    def _finalize():
        for g in range(groups):
            inv_l = pl.reciprocal(l_sc[g], approx=True)
            o_ref[0, :, g * head_dim:(g + 1) * head_dim] = (
                acc_sc[g] * inv_l).astype(o_ref.dtype)


def gqa_rope_flash_attention(qkv, cos, sin_signed, *,
                             num_heads, num_kv_heads, head_dim, tq=128, tkv=128):
    """qkv: (B, S, H + 2*kv_hidden) fused projection output; cos/sin_signed: (S, D).
    Returns causal GQA attention output in (B, S, H) layout (ready for o_proj)."""
    B, S, qkv_dim = qkv.shape
    hidden = num_heads * head_dim
    kv_hidden = num_kv_heads * head_dim
    assert qkv_dim == hidden + 2 * kv_hidden
    groups = num_heads // num_kv_heads
    scale = 1.0 / math.sqrt(head_dim)  # self.scaling is None -> SDPA default

    # Lane-dense blocks: head_dim-derived tiles must be multiples of 128 lanes.
    assert head_dim % 128 == 0, "head_dim must be a multiple of 128 (pack heads otherwise)"
    tq, tkv = min(tq, S), min(tkv, S)
    assert S % tq == 0 and S % tkv == 0
    nq, nk = S // tq, S // tkv
    gd = groups * head_dim

    def kv_block(qi, kv):
        # Clamp fully-masked (skipped) kv tiles onto the diagonal tile so the pipeline
        # re-uses the already-fetched block instead of DMAing dead data.
        return jnp.minimum(kv, (qi * tq + (tq - 1)) // tkv)

    q_spec = pl.BlockSpec((1, tq, gd), lambda b, h, qi, kv: (b, qi, h))
    k_spec = pl.BlockSpec((1, tkv, head_dim),
                          lambda b, h, qi, kv: (b, kv_block(qi, kv), num_heads + h))
    v_spec = pl.BlockSpec((1, tkv, head_dim),
                          lambda b, h, qi, kv: (b, kv_block(qi, kv),
                                                num_heads + num_kv_heads + h))
    cq_spec = pl.BlockSpec((tq, head_dim), lambda b, h, qi, kv: (qi, 0))
    sq_spec = pl.BlockSpec((tq, head_dim), lambda b, h, qi, kv: (qi, 0))
    ck_spec = pl.BlockSpec((tkv, head_dim), lambda b, h, qi, kv: (kv_block(qi, kv), 0))
    sk_spec = pl.BlockSpec((tkv, head_dim), lambda b, h, qi, kv: (kv_block(qi, kv), 0))
    o_spec = pl.BlockSpec((1, tq, gd), lambda b, h, qi, kv: (b, qi, h))

    kernel = partial(_flash_attn_kernel, groups=groups, head_dim=head_dim,
                     scale=scale, tq=tq, tkv=tkv)

    return pl.pallas_call(
        kernel,
        out_shape=jax.ShapeDtypeStruct((B, S, hidden), qkv.dtype),
        grid=(B, num_kv_heads, nq, nk),
        in_specs=[q_spec, k_spec, v_spec, cq_spec, sq_spec, ck_spec, sk_spec],
        out_specs=o_spec,
        scratch_shapes=[
            pltpu.VMEM((groups, tq, 1), jnp.float32),          # running row max m
            pltpu.VMEM((groups, tq, 1), jnp.float32),          # running denom l
            pltpu.VMEM((groups, tq, head_dim), jnp.float32),   # output accumulator
        ],
        compiler_params=pltpu.CompilerParams(
            dimension_semantics=("parallel", "parallel", "parallel", "arbitrary")),
    )(qkv, qkv, qkv, cos, sin_signed, cos, sin_signed)


# -------------------------------- full module --------------------------------
def attention_forward(x, freqs, params, *, num_heads, num_kv_heads, head_dim):
    """Equivalent of Attention.forward(x, freqs, attn_mask=None) with cache disabled."""
    cos, sin = freqs                        # (S, D); RoPE tables are position-only
    B, S, H = x.shape

    qkv = linear(x.reshape(B * S, H), params["wqkv"], params["bqkv"])
    qkv = qkv.reshape(B, S, -1)             # (B, S, H + 2*kv_hidden), no relayout

    # Fold rotate_half's sign into sin so the kernel uses a plain lane roll (XLU).
    half = head_dim // 2
    sin_signed = jnp.concatenate([-sin[:, :half], sin[:, half:]], axis=-1)

    # TODO(synk): KV-cache decode path (cache_enabled) and explicit attn_mask not implemented;
    # this is the prefill / is_causal forward only.
    attn = gqa_rope_flash_attention(
        qkv, cos, sin_signed,
        num_heads=num_heads, num_kv_heads=num_kv_heads, head_dim=head_dim)   # (B, S, H)

    out = linear(attn.reshape(B * S, H), params["wo"], params["bo"]).reshape(B, S, H)
    return out


# ----------------------------- pure-JAX reference -----------------------------
def _rotate_half(t):
    half = t.shape[-1] // 2
    return jnp.concatenate([-t[..., half:], t[..., :half]], axis=-1)


def reference_forward(x, freqs, params, *, num_heads, num_kv_heads, head_dim):
    cos, sin = freqs
    B, S, H = x.shape
    kv_hidden = num_kv_heads * head_dim
    groups = num_heads // num_kv_heads

    qkv = x @ params["wqkv"] + params["bqkv"]
    q, k, v = jnp.split(qkv, [H, H + kv_hidden], axis=-1)
    q = q.reshape(B, S, num_heads, head_dim).transpose(0, 2, 1, 3)
    k = k.reshape(B, S, num_kv_heads, head_dim).transpose(0, 2, 1, 3)
    v = v.reshape(B, S, num_kv_heads, head_dim).transpose(0, 2, 1, 3)

    c = cos[None, None]
    s = sin[None, None]
    q = q * c + _rotate_half(q) * s
    k = k * c + _rotate_half(k) * s

    k = jnp.repeat(k, groups, axis=1)
    v = jnp.repeat(v, groups, axis=1)

    scale = 1.0 / math.sqrt(head_dim)
    scores = jnp.einsum("bhqd,bhkd->bhqk", q, k) * scale
    mask = jnp.tril(jnp.ones((S, S), bool))
    scores = jnp.where(mask, scores, -1e30)
    p = jax.nn.softmax(scores, axis=-1)
    attn = jnp.einsum("bhqk,bhkd->bhqd", p, v)
    attn = attn.transpose(0, 2, 1, 3).reshape(B, S, H)
    return attn @ params["wo"] + params["bo"]


# ------------------------------------ main ------------------------------------
if __name__ == "__main__":
    B, S = 2, 256
    num_heads, num_kv_heads, head_dim = 4, 2, 128
    hidden = num_heads * head_dim            # 512
    kv_hidden = num_kv_heads * head_dim      # 256
    qkv_out = hidden + 2 * kv_hidden         # 1024

    key = jax.random.PRNGKey(0)
    kx, kw1, kb1, kw2 = jax.random.split(key, 4)

    x = jax.random.normal(kx, (B, S, hidden), jnp.float32)

    # PyTorch weights are (out, in); stored pre-transposed as (in, out).
    params = {
        "wqkv": jax.random.normal(kw1, (hidden, qkv_out), jnp.float32) * (1.0 / math.sqrt(hidden)),
        "bqkv": jax.random.normal(kb1, (qkv_out,), jnp.float32) * 0.02,  # cfg.attn_qkv_bias = True
        "wo": jax.random.normal(kw2, (hidden, hidden), jnp.float32) * (1.0 / math.sqrt(hidden)),
        "bo": jnp.zeros((hidden,), jnp.float32),                          # cfg.attn_out_bias = False
    }

    # RoPE tables, shared across batch: cos/sin of shape (S, head_dim).
    pos = jnp.arange(S, dtype=jnp.float32)
    inv_freq = 1.0 / (10000.0 ** (jnp.arange(0, head_dim, 2, dtype=jnp.float32) / head_dim))
    angles = jnp.einsum("s,d->sd", pos, inv_freq)            # (S, D/2)
    emb = jnp.concatenate([angles, angles], axis=-1)         # (S, D)
    cos = jnp.cos(emb)
    sin = jnp.sin(emb)

    out = attention_forward(
        x, (cos, sin), params,
        num_heads=num_heads, num_kv_heads=num_kv_heads, head_dim=head_dim,
    )
    out = jax.block_until_ready(out)

    ref = reference_forward(
        x, (cos, sin), params,
        num_heads=num_heads, num_kv_heads=num_kv_heads, head_dim=head_dim,
    )
    assert out.shape == (B, S, hidden)
    # bf16 MXU inputs (f32 accumulation) in the attention dots -> compare with bf16-level tolerance.
    assert jnp.allclose(out, ref, atol=5e-2, rtol=5e-2), (
        "Pallas output mismatch vs reference: max abs err = "
        f"{float(jnp.max(jnp.abs(out - ref)))}")

    print("KERNEL_OK")
</pallas_src>

<mosaic_0001>
module attributes {stable_mosaic.version = 11 : i64} {
  func.func @_linear_kernel(%arg0: i32, %arg1: i32, %arg2: i32, %arg3: memref<256x512xf32, #tpu.memory_space<vmem>>, %arg4: memref<512x256xf32, #tpu.memory_space<vmem>>, %arg5: memref<1x256xf32, #tpu.memory_space<vmem>>, %arg6: memref<256x256xf32, #tpu.memory_space<vmem>>, %arg7: memref<256x256xf32, #tpu.memory_space<vmem>>) attributes {dimension_semantics = [#tpu.dimension_semantics<parallel>, #tpu.dimension_semantics<parallel>, #tpu.dimension_semantics<arbitrary>], iteration_bounds = array<i64: 2, 4, 1>, scalar_prefetch = 0 : i64, scratch_operands = 1 : i64, tpu.core_type = #tpu.core_type<tc>, window_params = [{transform_indices = @transform_0, window_bounds = array<i64: 256, 512>}, {transform_indices = @transform_1, window_bounds = array<i64: 512, 256>}, {transform_indices = @transform_2, window_bounds = array<i64: 1, 256>}, {transform_indices = @transform_3, window_bounds = array<i64: 256, 256>}]} {
    %c0_i32 = arith.constant 0 : i32
    %0 = arith.cmpi eq, %arg2, %c0_i32 : i32
    %1 = arith.extui %0 : i1 to i32
    %c0_i32_0 = arith.constant 0 : i32
    %2 = arith.cmpi ne, %1, %c0_i32_0 : i32
    scf.if %2 {
      %cst_10 = arith.constant 0.000000e+00 : f32
      %12 = vector.broadcast %cst_10 : f32 to vector<256x256xf32>
      %c0_11 = arith.constant 0 : index
      %c0_12 = arith.constant 0 : index
      %13 = vector.load %arg7[%c0_11, %c0_12] : memref<256x256xf32, #tpu.memory_space<vmem>>, vector<256x256xf32>
      tpu.vector_store %arg7[%c0_11, %c0_12], %12 {strides = array<i32>} : memref<256x256xf32, #tpu.memory_space<vmem>>, vector<256x256xf32>,
    } else {
    }
    %c0 = arith.constant 0 : index
    %c0_1 = arith.constant 0 : index
    %3 = vector.load %arg7[%c0, %c0_1] : memref<256x256xf32, #tpu.memory_space<vmem>>, vector<256x256xf32>
    %c0_2 = arith.constant 0 : index
    %c0_3 = arith.constant 0 : index
    %4 = vector.load %arg3[%c0_2, %c0_3] : memref<256x512xf32, #tpu.memory_space<vmem>>, vector<256x512xf32>
    %c0_4 = arith.constant 0 : index
    %c0_5 = arith.constant 0 : index
    %5 = vector.load %arg4[%c0_4, %c0_5] : memref<512x256xf32, #tpu.memory_space<vmem>>, vector<512x256xf32>
    %cst = arith.constant dense<0.000000e+00> : vector<256x256xf32>
    %6 = tpu.matmul %4, %5, %cst {dimension_numbers = #tpu.dot_dimension_numbers<[1], [0], [0], [1], [0, 0, 1, 1], [], []>} : vector<256x512xf32>, vector<512x256xf32>, vector<256x256xf32> -> vector<256x256xf32>
    %7 = arith.addf %3, %6 : vector<256x256xf32>
    %c0_6 = arith.constant 0 : index
    %c0_7 = arith.constant 0 : index
    %8 = vector.load %arg7[%c0_6, %c0_7] : memref<256x256xf32, #tpu.memory_space<vmem>>, vector<256x256xf32>
    tpu.vector_store %arg7[%c0_6, %c0_7], %7 {strides = array<i32>} : memref<256x256xf32, #tpu.memory_space<vmem>>, vector<256x256xf32>,
    %c0_i32_8 = arith.constant 0 : i32
    %9 = arith.cmpi eq, %arg2, %c0_i32_8 : i32
    %10 = arith.extui %9 : i1 to i32
    %c0_i32_9 = arith.constant 0 : i32
    %11 = arith.cmpi ne, %10, %c0_i32_9 : i32
    scf.if %11 {
      %c0_10 = arith.constant 0 : index
      %c0_11 = arith.constant 0 : index
      %12 = vector.load %arg7[%c0_10, %c0_11] : memref<256x256xf32, #tpu.memory_space<vmem>>, vector<256x256xf32>
      %c0_12 = arith.constant 0 : index
      %c0_13 = arith.constant 0 : index
      %13 = vector.load %arg5[%c0_12, %c0_13] : memref<1x256xf32, #tpu.memory_space<vmem>>, vector<1x256xf32>
      %14 = vector.broadcast %13 : vector<1x256xf32> to vector<256x256xf32>
      %15 = arith.addf %12, %14 : vector<256x256xf32>
      %c0_14 = arith.constant 0 : index
      %c0_15 = arith.constant 0 : index
      %16 = vector.load %arg6[%c0_14, %c0_15] : memref<256x256xf32, #tpu.memory_space<vmem>>, vector<256x256xf32>
      tpu.vector_store %arg6[%c0_14, %c0_15], %15 {strides = array<i32>} : memref<256x256xf32, #tpu.memory_space<vmem>>, vector<256x256xf32>,
    } else {
    }
    return
  }
  func.func @transform_0(%arg0: i32, %arg1: i32, %arg2: i32) -> (i32, i32) {
    %c0_i32 = arith.constant 0 : i32
    return %arg0, %arg2 : i32, i32
  }
  func.func @transform_1(%arg0: i32, %arg1: i32, %arg2: i32) -> (i32, i32) {
    %c0_i32 = arith.constant 0 : i32
    return %arg2, %arg1 : i32, i32
  }
  func.func @transform_2(%arg0: i32, %arg1: i32, %arg2: i32) -> (i32, i32) {
    %c0_i32 = arith.constant 0 : i32
    %c0_i32_0 = arith.constant 0 : i32
    return %c0_i32, %arg1 : i32, i32
  }
  func.func @transform_3(%arg0: i32, %arg1: i32, %arg2: i32) -> (i32, i32) {
    %c0_i32 = arith.constant 0 : i32
    return %arg0, %arg1 : i32, i32
  }
}

</mosaic_0001>

<llo_original>
// kernel: tpu_custom_call.1
$region0: #{tpu_custom_call.1}
  #allocation0 [shape = 'u32[]', space=smem, size = 0x4, offset = 0x4, fixed_abs, tag = 'smem constant byte address 0x4 - core index']
  #allocation1 [shape = 'u32[72,128]{1,0:T(1,128)}', space=vmem, size = 0x9000, scoped, tag = 'internal scratch']
  #allocation2 [shape = 'f32[256,256]{1,0:T(8,128)}', space=vmem, size = 0x40000, scoped, tag = 'scratch operand']
  %s0 = inlined_call_operand.hbm [shape: f32[512,512], index: 0, kind: input, shape index: {}]
  %s1 = inlined_call_operand.hbm [shape: f32[512,1024], index: 1, kind: input, shape index: {}]
  %s2 = inlined_call_operand.hbm [shape: f32[1,1024], index: 2, kind: input, shape index: {}]
  %s3 = inlined_call_operand.hbm [shape: f32[512,1024], index: 3, kind: output, shape index: {}]
  %s4 = sld [smem:[#allocation0]]
  $region65: #{tpu_custom_call.1} parent=0
    _
  %s6 = ssub.s32 1, %s4
  %s7 = scalar_select 0, %s6, %s4
  $region1: #{tpu_custom_call.1} parent=0
    #allocation3 [shape = 'u8[1048576]{0}', space=vmem, size = 0x100000, scoped, tag = 'input window, operand 0']
    #allocation4 [shape = 's32[2]{0}', space=sflag, size = 0x8, scoped, tag = 'scoped memory for tpu_custom_call.1']
    #allocation5 [shape = 's32[2]{0}', space=sflag, size = 0x8, scoped, tag = 'scoped memory for tpu_custom_call.1']
    #allocation6 [shape = 'u8[1048576]{0}', space=vmem, size = 0x100000, scoped, tag = 'input window, operand 1']
    #allocation7 [shape = 's32[2]{0}', space=sflag, size = 0x8, scoped, tag = 'scoped memory for tpu_custom_call.1']
    #allocation8 [shape = 'u8[2048]{0}', space=vmem, size = 0x800, scoped, tag = 'input window, operand 2']
    #allocation9 [shape = 'u8[524288]{0}', space=vmem, size = 0x80000, scoped, tag = 'output window, operand 0']
    %8 = vsyncpa [#allocation4], 0
    %s9 = scalar_lea.sflag [#allocation4], 1
    %10 = vsyncpa %s9, 0
    %11 = vsyncpa [#allocation7], 0
    %s12 = scalar_lea.sflag [#allocation7], 1
    %13 = vsyncpa %s12, 0
    %14 = vsyncpa [#allocation5], 0
    %s15 = scalar_lea.sflag [#allocation5], 1
    %16 = vsyncpa %s15, 0
    loop: start=0, step=1, limit=10
    $region2: #{tpu_custom_call.1} parent=1 // loop_pre_header
      _
    $region3: #{tpu_custom_call.1} parent=1 // loop_header
      %s18 = sphi 0, %s22
      %p19 = scmp.ge.s32.totalorder %s18, 10
      %s25 = sphi 0, %s44
      %s26 = sphi 0, %s40
      %s27 = sphi 0, %s36
      %s28 = sphi 0, %s25
      %s29 = sphi 0, %s26
      %s30 = sphi 0, %s27
      %s31 = sphi 0, %s28
      %s32 = sphi 0, %s29
      %s33 = sphi 0, %s30
      %s49 = sphi 0, %s51
      %s52 = sphi 0, %s49
      %s53 = sphi 0, %s52
      %s69 = sphi 0, %s53
      %s77 = sphi 0, %s79
      %s80 = sphi 0, %s77
      %s81 = sphi 0, %s80
      %s97 = sphi 0, %s81
      %s103 = sphi 0, %s105
      %s106 = sphi 0, %s103
      %s107 = sphi 0, %s106
      %s123 = sphi 0, %s107
      %s131 = sphi 0, %s133
      %s134 = sphi 0, %s131
      %s135 = sphi 0, %s134
      %s151 = sphi 0, %s135
    $region4: #{tpu_custom_call.1} parent=1 // loop_header_branch
      %21 = sbr.rel (%p19) target = $region8
    $region5: #{tpu_custom_call.1} parent=1 // loop_body
      %s23 = ssub.s32 %s18, 1
      %s24 = ssub.s32 %s18, 2
      %s34 = sadd.s32 1, %s27
      %p35 = scmp.ge.s32.totalorder %s34, 1
      %s36 = scalar_select %p35, 0, %s34
      %s37 = sadd.s32 1, %s26
      %s38 = scalar_select %p35, %s37, %s26
      %p39 = scmp.ge.s32.totalorder %s38, 4
      %s40 = scalar_select %p39, 0, %s38
      %s41 = sadd.s32 1, %s25
      %s42 = scalar_select %p39, %s41, %s25
      %p43 = scmp.ge.s32.totalorder %s42, 2
      %s44 = scalar_select %p43, 0, %s42
      %s45 = ssub.s32 %s25, %s44
      %s46 = ssub.s32 %s27, %s36
      %s47 = sor.u32 %s45, %s46
      %p48 = scmp.eq.s32.totalorder %s47, 0
      %s50 = sadd.s32 %s49, 1
      %s51 = scalar_select %p48, %s49, %s50
      %p54 = pneg %p48
      %p55 = scmp.eq.s32.totalorder %s18, 7
      %p56 = por %p54, %p55
      %p57 = scmp.ne.s32.totalorder %s49, %s52
      %p58 = scmp.eq.s32.totalorder %s18, 0
      %p59 = por %p57, %p58
      %p60 = scmp.ne.s32.totalorder %s49, %s52
      %p61 = scmp.eq.s32.totalorder %s23, 7
      %p62 = por %p60, %p61
      %p63 = scmp.ne.s32.totalorder %s52, %s53
      %p64 = scmp.eq.s32.totalorder %s23, 0
      %p65 = por %p63, %p64
      %p66 = scmp.ne.s32.totalorder %s52, %s53
      %p67 = scmp.eq.s32.totalorder %s24, 7
      %p68 = por %p66, %p67
      %p70 = scmp.ne.s32.totalorder %s53, %s69
      %p71 = scmp.eq.s32.totalorder %s24, 0
      %p72 = por %p70, %p71
      %s73 = ssub.s32 %s27, %s36
      %s74 = ssub.s32 %s26, %s40
      %s75 = sor.u32 %s73, %s74
      %p76 = scmp.eq.s32.totalorder %s75, 0
      %s78 = sadd.s32 %s77, 1
      %s79 = scalar_select %p76, %s77, %s78
      %p82 = pneg %p76
      %p83 = scmp.eq.s32.totalorder %s18, 7
      %p84 = por %p82, %p83
      %p85 = scmp.ne.s32.totalorder %s77, %s80
      %p86 = scmp.eq.s32.totalorder %s18, 0
      %p87 = por %p85, %p86
      %p88 = scmp.ne.s32.totalorder %s77, %s80
      %p89 = scmp.eq.s32.totalorder %s23, 7
      %p90 = por %p88, %p89
      %p91 = scmp.ne.s32.totalorder %s80, %s81
      %p92 = scmp.eq.s32.totalorder %s23, 0
      %p93 = por %p91, %p92
      %p94 = scmp.ne.s32.totalorder %s80, %s81
      %p95 = scmp.eq.s32.totalorder %s24, 7
      %p96 = por %p94, %p95
      %p98 = scmp.ne.s32.totalorder %s81, %s97
      %p99 = scmp.eq.s32.totalorder %s24, 0
      %p100 = por %p98, %p99
      %s101 = ssub.s32 %s26, %s40
      %p102 = scmp.eq.s32.totalorder %s101, 0
      %s104 = sadd.s32 %s103, 1
      %s105 = scalar_select %p102, %s103, %s104
      %p108 = pneg %p102
      %p109 = scmp.eq.s32.totalorder %s18, 7
      %p110 = por %p108, %p109
      %p111 = scmp.ne.s32.totalorder %s103, %s106
      %p112 = scmp.eq.s32.totalorder %s18, 0
      %p113 = por %p111, %p112
      %p114 = scmp.ne.s32.totalorder %s103, %s106
      %p115 = scmp.eq.s32.totalorder %s23, 7
      %p116 = por %p114, %p115
      %p117 = scmp.ne.s32.totalorder %s106, %s107
      %p118 = scmp.eq.s32.totalorder %s23, 0
      %p119 = por %p117, %p118
      %p120 = scmp.ne.s32.totalorder %s106, %s107
      %p121 = scmp.eq.s32.totalorder %s24, 7
      %p122 = por %p120, %p121
      %p124 = scmp.ne.s32.totalorder %s107, %s123
      %p125 = scmp.eq.s32.totalorder %s24, 0
      %p126 = por %p124, %p125
      %s127 = ssub.s32 %s25, %s44
      %s128 = ssub.s32 %s26, %s40
      %s129 = sor.u32 %s127, %s128
      %p130 = scmp.eq.s32.totalorder %s129, 0
      %s132 = sadd.s32 %s131, 1
      %s133 = scalar_select %p130, %s131, %s132
      %p136 = pneg %p130
      %p137 = scmp.eq.s32.totalorder %s18, 7
      %p138 = por %p136, %p137
      %p139 = scmp.ne.s32.totalorder %s131, %s134
      %p140 = scmp.eq.s32.totalorder %s18, 0
      %p141 = por %p139, %p140
      %p142 = scmp.ne.s32.totalorder %s131, %s134
      %p143 = scmp.eq.s32.totalorder %s23, 7
      %p144 = por %p142, %p143
      %p145 = scmp.ne.s32.totalorder %s134, %s135
      %p146 = scmp.eq.s32.totalorder %s23, 0
      %p147 = por %p145, %p146
      %p148 = scmp.ne.s32.totalorder %s134, %s135
      %p149 = scmp.eq.s32.totalorder %s24, 7
      %p150 = por %p148, %p149
      %p152 = scmp.ne.s32.totalorder %s135, %s151
      %p153 = scmp.eq.s32.totalorder %s24, 0
      %p154 = por %p152, %p153
      %p155 = scmp.le.s32.totalorder 1, %s18
      %p156 = scmp.lt.s32.totalorder %s18, 9
      %p157 = pnand %p155, %p156
      %p158 = pneg %p157
      // Predicated region
      $region9: #{tpu_custom_call.1} parent=5 // pred_check
        _
      $region10: #{tpu_custom_call.1} parent=5 // pred_check_branch
        %160 = sbr.rel (%p157) target = $region12
      $region11: #{tpu_custom_call.1} parent=5 // pred_region
        %s161 = ssub.s32 %s18, 1
      $region12: #{tpu_custom_call.1} parent=5 // pred_fallthru
        _
      %p162 = scmp.lt.s32.totalorder %s18, 8
      // Predicated region
      $region13: #{tpu_custom_call.1} parent=5 // pred_check
        %p163 = pneg %p162
      $region14: #{tpu_custom_call.1} parent=5 // pred_check_branch
        %165 = sbr.rel (%p163) target = $region16
      $region15: #{tpu_custom_call.1} parent=5 // pred_region
        // Predicated region
        $region17: #{tpu_custom_call.1} parent=15 // pred_check
          %p166 = pneg %p59
        $region18: #{tpu_custom_call.1} parent=15 // pred_check_branch
          %168 = sbr.rel (%p166) target = $region20
        $region19: #{tpu_custom_call.1} parent=15 // pred_region
          %s169 = sand.u32 %s49, 1
          %s170 = scalar_lea.sflag [#allocation4], %s169
          %s171 = sand.u32 %s49, 1
          %s172 = smul.addr %s171, 1024
          %s173 = scalar_lea.vmem [#allocation3], %s172
          %s174 = smul.u32 32, %s25
          %s175 = smul.u32 4, %s27
          %177 = vsyncadd %s170, 0
          %s178 = smul.addr %s174, 4
          %s179 = sadd.s32 %s175, %s178
          %s180 = smul.addr %s179, 8
          %s181 = scalar_lea.hbm %s0, %s180
          %s182 = sshll.u32 %s181, 4
          %s183 = int_to_ptr.hbm [resolvable:$true] %s182
          %s184 = sshll.u32 %s173, 4
          %s185 = int_to_ptr.vmem [resolvable:$true] %s184
          %190 = dma.hbm_to_vmem [thread:$0]  %s183, 16384, %s185, %s170, 512, 512, 32
        $region20: #{tpu_custom_call.1} parent=15 // pred_fallthru
          _
        // Predicated region
        $region21: #{tpu_custom_call.1} parent=15 // pred_check
          %p191 = pneg %p87
        $region22: #{tpu_custom_call.1} parent=15 // pred_check_branch
          %193 = sbr.rel (%p191) target = $region24
        $region23: #{tpu_custom_call.1} parent=15 // pred_region
          %s194 = sand.u32 %s18, 1
          %s195 = scalar_lea.sflag [#allocation7], %s194
          %s196 = sand.u32 %s77, 1
          %s197 = smul.addr %s196, 1024
          %s198 = scalar_lea.vmem [#allocation6], %s197
          %s199 = smul.u32 64, %s27
          %s200 = smul.u32 2, %s26
          %202 = vsyncadd %s195, 0
          %s203 = smul.addr %s199, 8
          %s204 = sadd.s32 %s200, %s203
          %s205 = smul.addr %s204, 8
          %s206 = scalar_lea.hbm %s1, %s205
          %s207 = sshll.u32 %s206, 4
          %s208 = int_to_ptr.hbm [resolvable:$true] %s207
          %s209 = sshll.u32 %s198, 4
          %s210 = int_to_ptr.vmem [resolvable:$true] %s209
          %215 = dma.hbm_to_vmem [thread:$0]  %s208, 16384, %s210, %s195, 1024, 256, 16
        $region24: #{tpu_custom_call.1} parent=15 // pred_fallthru
          _
        // Predicated region
        $region25: #{tpu_custom_call.1} parent=15 // pred_check
          %p216 = pneg %p113
        $region26: #{tpu_custom_call.1} parent=15 // pred_check_branch
          %218 = sbr.rel (%p216) target = $region28
        $region27: #{tpu_custom_call.1} parent=15 // pred_region
          %s219 = sand.u32 %s18, 1
          %s220 = scalar_lea.sflag [#allocation7], %s219
          %s221 = sand.u32 %s103, 1
          %s222 = smul.addr %s221, 2
          %s223 = scalar_lea.vmem [#allocation8], %s222
          %s224 = smul.u32 2, %s26
          %226 = vsyncadd %s220, 0
          %s227 = scalar_lea.hbm %s2, %s224
          %s229 = sshll.u32 %s227, 4
          %s230 = int_to_ptr.hbm [resolvable:$true] %s229
          %s231 = sshll.u32 %s223, 4
          %s232 = int_to_ptr.vmem [resolvable:$true] %s231
          %234 = dma.hbm_to_vmem [thread:$0]  %s230, 32, %s232, %s220
        $region28: #{tpu_custom_call.1} parent=15 // pred_fallthru
          _
      $region16: #{tpu_custom_call.1} parent=5 // pred_fallthru
        _
      %p235 = scmp.le.s32.totalorder 1, %s18
      %p236 = scmp.lt.s32.totalorder %s18, 9
      %p237 = pnand %p235, %p236
      %p238 = pneg %p237
      // Predicated region
      $region29: #{tpu_custom_call.1} parent=5 // pred_check
        _
      $region30: #{tpu_custom_call.1} parent=5 // pred_check_branch
        %240 = sbr.rel (%p237) target = $region32
      $region31: #{tpu_custom_call.1} parent=5 // pred_region
        %s241 = ssub.s32 %s18, 1
        %s242 = sand.u32 %s52, 1
        %s243 = scalar_lea.sflag [#allocation4], %s242
        %s244 = sand.u32 %s52, 1
        %s245 = smul.addr %s244, 1024
        %s246 = scalar_lea.vmem [#allocation3], %s245
        // Predicated region
        $region33: #{tpu_custom_call.1} parent=31 // pred_check
          %p247 = pneg %p65
        $region34: #{tpu_custom_call.1} parent=31 // pred_check_branch
          %249 = sbr.rel (%p247) target = $region36
        $region35: #{tpu_custom_call.1} parent=31 // pred_region
          %251 = dma.done %s243, 16384
        $region36: #{tpu_custom_call.1} parent=31 // pred_fallthru
          _
        %s252 = sand.u32 %s23, 1
        %s253 = scalar_lea.sflag [#allocation7], %s252
        %s254 = sand.u32 %s80, 1
        %s255 = smul.addr %s254, 1024
        %s256 = scalar_lea.vmem [#allocation6], %s255
        // Predicated region
        $region37: #{tpu_custom_call.1} parent=31 // pred_check
          %p257 = pneg %p93
        $region38: #{tpu_custom_call.1} parent=31 // pred_check_branch
          %259 = sbr.rel (%p257) target = $region40
        $region39: #{tpu_custom_call.1} parent=31 // pred_region
          %261 = dma.done %s253, 16384
        $region40: #{tpu_custom_call.1} parent=31 // pred_fallthru
          _
        %s262 = sand.u32 %s23, 1
        %s263 = scalar_lea.sflag [#allocation7], %s262
        %s264 = sand.u32 %s106, 1
        %s265 = smul.addr %s264, 2
        %s266 = scalar_lea.vmem [#allocation8], %s265
        // Predicated region
        $region41: #{tpu_custom_call.1} parent=31 // pred_check
          %p267 = pneg %p119
        $region42: #{tpu_custom_call.1} parent=31 // pred_check_branch
          %269 = sbr.rel (%p267) target = $region44
        $region43: #{tpu_custom_call.1} parent=31 // pred_region
          %271 = dma.done %s263, 32
        $region44: #{tpu_custom_call.1} parent=31 // pred_fallthru
          _
        %s272 = sand.u32 %s52, 1
        %s273 = scalar_lea.sflag [#allocation4], %s272
        %s274 = sand.u32 %s52, 1
        %s275 = smul.addr %s274, 1024
        %s276 = scalar_lea.vmem [#allocation3], %s275
        %p277 = pneg %p65
        %p278 = pneg %p62
        %s279 = sand.u32 %s23, 1
        %s280 = scalar_lea.sflag [#allocation7], %s279
        %s281 = sand.u32 %s80, 1
        %s282 = smul.addr %s281, 1024
        %s283 = scalar_lea.vmem [#allocation6], %s282
        %p284 = pneg %p93
        %p285 = pneg %p90
        %s286 = sand.u32 %s23, 1
        %s287 = scalar_lea.sflag [#allocation7], %s286
        %s288 = sand.u32 %s106, 1
        %s289 = smul.addr %s288, 2
        %s290 = scalar_lea.vmem [#allocation8], %s289
        %p291 = pneg %p119
        %p292 = pneg %p116
        %p293 = pneg %p147
        %p294 = pneg %p144
        %s295 = sand.u32 %s134, 1
        %s296 = scalar_lea.sflag [#allocation5], %s295
        %s297 = sand.u32 %s134, 1
        %s298 = smul.addr %s297, 512
        %s299 = scalar_lea.vmem [#allocation9], %s298
        %s300 = smul.u32 32, %s28
        %s301 = smul.u32 4, %s30
        %s302 = smul.u32 64, %s30
        %s303 = smul.u32 2, %s29
        %s304 = smul.u32 2, %s29
        %s305 = smul.u32 32, %s28
        %s306 = smul.u32 2, %s29
        %p307 = scmp.eq.s32.totalorder %s30, 0
        // Predicated region
        $region45: #{tpu_custom_call.1} parent=31 // pred_check
          %p308 = pneg %p307
        $region46: #{tpu_custom_call.1} parent=31 // pred_check_branch
          %310 = sbr.rel (%p308) target = $region48
        $region47: #{tpu_custom_call.1} parent=31 // pred_region
          %311 = vst [vmem:[#allocation2] sm:$0xff] 0.0
          %312 = vst [vmem:[#allocation2 + $0x8] sm:$0xff] 0.0
          %313 = vst [vmem:[#allocation2 + $0x10] sm:$0xff] 0.0
          %314 = vst [vmem:[#allocation2 + $0x18] sm:$0xff] 0.0
          %315 = vst [vmem:[#allocation2 + $0x20] sm:$0xff] 0.0
          %316 = vst [vmem:[#allocation2 + $0x28] sm:$0xff] 0.0
          %317 = vst [vmem:[#allocation2 + $0x30] sm:$0xff] 0.0
          %318 = vst [vmem:[#allocation2 + $0x38] sm:$0xff] 0.0
          %319 = vst [vmem:[#allocation2 + $0x40] sm:$0xff] 0.0
          %320 = vst [vmem:[#allocation2 + $0x48] sm:$0xff] 0.0
          %321 = vst [vmem:[#allocation2 + $0x50] sm:$0xff] 0.0
          %322 = vst [vmem:[#allocation2 + $0x58] sm:$0xff] 0.0
          %323 = vst [vmem:[#allocation2 + $0x60] sm:$0xff] 0.0
          %324 = vst [vmem:[#allocation2 + $0x68] sm:$0xff] 0.0
          %325 = vst [vmem:[#allocation2 + $0x70] sm:$0xff] 0.0
          %326 = vst [vmem:[#allocation2 + $0x78] sm:$0xff] 0.0
          %327 = vst [vmem:[#allocation2 + $0x80] sm:$0xff] 0.0
          %328 = vst [vmem:[#allocation2 + $0x88] sm:$0xff] 0.0
          %329 = vst [vmem:[#allocation2 + $0x90] sm:$0xff] 0.0
          %330 = vst [vmem:[#allocation2 + $0x98] sm:$0xff] 0.0
          %331 = vst [vmem:[#allocation2 + $0xa0] sm:$0xff] 0.0
          %332 = vst [vmem:[#allocation2 + $0xa8] sm:$0xff] 0.0
          %333 = vst [vmem:[#allocation2 + $0xb0] sm:$0xff] 0.0
          %334 = vst [vmem:[#allocation2 + $0xb8] sm:$0xff] 0.0
          %335 = vst [vmem:[#allocation2 + $0xc0] sm:$0xff] 0.0
          %336 = vst [vmem:[#allocation2 + $0xc8] sm:$0xff] 0.0
          %337 = vst [vmem:[#allocation2 + $0xd0] sm:$0xff] 0.0
          %338 = vst [vmem:[#allocation2 + $0xd8] sm:$0xff] 0.0
          %339 = vst [vmem:[#allocation2 + $0xe0] sm:$0xff] 0.0
          %340 = vst [vmem:[#allocation2 + $0xe8] sm:$0xff] 0.0
          %341 = vst [vmem:[#allocation2 + $0xf0] sm:$0xff] 0.0
          %342 = vst [vmem:[#allocation2 + $0xf8] sm:$0xff] 0.0
          %343 = vst [vmem:[#allocation2 + $0x100] sm:$0xff] 0.0
          %344 = vst [vmem:[#allocation2 + $0x108] sm:$0xff] 0.0
          %345 = vst [vmem:[#allocation2 + $0x110] sm:$0xff] 0.0
          %346 = vst [vmem:[#allocation2 + $0x118] sm:$0xff] 0.0
          %347 = vst [vmem:[#allocation2 + $0x120] sm:$0xff] 0.0
          %348 = vst [vmem:[#allocation2 + $0x128] sm:$0xff] 0.0
          %349 = vst [vmem:[#allocation2 + $0x130] sm:$0xff] 0.0
          %350 = vst [vmem:[#allocation2 + $0x138] sm:$0xff] 0.0
          %351 = vst [vmem:[#allocation2 + $0x140] sm:$0xff] 0.0
          %352 = vst [vmem:[#allocation2 + $0x148] sm:$0xff] 0.0
          %353 = vst [vmem:[#allocation2 + $0x150] sm:$0xff] 0.0
          %354 = vst [vmem:[#allocation2 + $0x158] sm:$0xff] 0.0
          %355 = vst [vmem:[#allocation2 + $0x160] sm:$0xff] 0.0
          %356 = vst [vmem:[#allocation2 + $0x168] sm:$0xff] 0.0
          %357 = vst [vmem:[#allocation2 + $0x170] sm:$0xff] 0.0
          %358 = vst [vmem:[#allocation2 + $0x178] sm:$0xff] 0.0
          %359 = vst [vmem:[#allocation2 + $0x180] sm:$0xff] 0.0
          %360 = vst [vmem:[#allocation2 + $0x188] sm:$0xff] 0.0
          %361 = vst [vmem:[#allocation2 + $0x190] sm:$0xff] 0.0
          %362 = vst [vmem:[#allocation2 + $0x198] sm:$0xff] 0.0
          %363 = vst [vmem:[#allocation2 + $0x1a0] sm:$0xff] 0.0
          %364 = vst [vmem:[#allocation2 + $0x1a8] sm:$0xff] 0.0
          %365 = vst [vmem:[#allocation2 + $0x1b0] sm:$0xff] 0.0
          %366 = vst [vmem:[#allocation2 + $0x1b8] sm:$0xff] 0.0
          %367 = vst [vmem:[#allocation2 + $0x1c0] sm:$0xff] 0.0
          %368 = vst [vmem:[#allocation2 + $0x1c8] sm:$0xff] 0.0
          %369 = vst [vmem:[#allocation2 + $0x1d0] sm:$0xff] 0.0
          %370 = vst [vmem:[#allocation2 + $0x1d8] sm:$0xff] 0.0
          %371 = vst [vmem:[#allocation2 + $0x1e0] sm:$0xff] 0.0
          %372 = vst [vmem:[#allocation2 + $0x1e8] sm:$0xff] 0.0
          %373 = vst [vmem:[#allocation2 + $0x1f0] sm:$0xff] 0.0
          %374 = vst [vmem:[#allocation2 + $0x1f8] sm:$0xff] 0.0
        $region48: #{tpu_custom_call.1} parent=31 // pred_fallthru
          _
        %v375 = vld [vmem:[#allocation2] sm:$0xff]
        %v376 = vld [vmem:[#allocation2 + $0x8] sm:$0xff]
        %v377 = vld [vmem:[#allocation2 + $0x10] sm:$0xff]
        %v378 = vld [vmem:[#allocation2 + $0x18] sm:$0xff]
        %v379 = vld [vmem:[#allocation2 + $0x20] sm:$0xff]
        %v380 = vld [vmem:[#allocation2 + $0x28] sm:$0xff]
        %v381 = vld [vmem:[#allocation2 + $0x30] sm:$0xff]
        %v382 = vld [vmem:[#allocation2 + $0x38] sm:$0xff]
        %v383 = vld [vmem:[#allocation2 + $0x40] sm:$0xff]
        %v384 = vld [vmem:[#allocation2 + $0x48] sm:$0xff]
        %v385 = vld [vmem:[#allocation2 + $0x50] sm:$0xff]
        %v386 = vld [vmem:[#allocation2 + $0x58] sm:$0xff]
        %v387 = vld [vmem:[#allocation2 + $0x60] sm:$0xff]
        %v388 = vld [vmem:[#allocation2 + $0x68] sm:$0xff]
        %v389 = vld [vmem:[#allocation2 + $0x70] sm:$0xff]
        %v390 = vld [vmem:[#allocation2 + $0x78] sm:$0xff]
        %v391 = vld [vmem:[#allocation2 + $0x80] sm:$0xff]
        %v392 = vld [vmem:[#allocation2 + $0x88] sm:$0xff]
        %v393 = vld [vmem:[#allocation2 + $0x90] sm:$0xff]
        %v394 = vld [vmem:[#allocation2 + $0x98] sm:$0xff]
        %v395 = vld [vmem:[#allocation2 + $0xa0] sm:$0xff]
        %v396 = vld [vmem:[#allocation2 + $0xa8] sm:$0xff]
        %v397 = vld [vmem:[#allocation2 + $0xb0] sm:$0xff]
        %v398 = vld [vmem:[#allocation2 + $0xb8] sm:$0xff]
        %v399 = vld [vmem:[#allocation2 + $0xc0] sm:$0xff]
        %v400 = vld [vmem:[#allocation2 + $0xc8] sm:$0xff]
        %v401 = vld [vmem:[#allocation2 + $0xd0] sm:$0xff]
        %v402 = vld [vmem:[#allocation2 + $0xd8] sm:$0xff]
        %v403 = vld [vmem:[#allocation2 + $0xe0] sm:$0xff]
        %v404 = vld [vmem:[#allocation2 + $0xe8] sm:$0xff]
        %v405 = vld [vmem:[#allocation2 + $0xf0] sm:$0xff]
        %v406 = vld [vmem:[#allocation2 + $0xf8] sm:$0xff]
        %v407 = vld [vmem:[#allocation2 + $0x100] sm:$0xff]
        %v408 = vld [vmem:[#allocation2 + $0x108] sm:$0xff]
        %v409 = vld [vmem:[#allocation2 + $0x110] sm:$0xff]
        %v410 = vld [vmem:[#allocation2 + $0x118] sm:$0xff]
        %v411 = vld [vmem:[#allocation2 + $0x120] sm:$0xff]
        %v412 = vld [vmem:[#allocation2 + $0x128] sm:$0xff]
        %v413 = vld [vmem:[#allocation2 + $0x130] sm:$0xff]
        %v414 = vld [vmem:[#allocation2 + $0x138] sm:$0xff]
        %v415 = vld [vmem:[#allocation2 + $0x140] sm:$0xff]
        %v416 = vld [vmem:[#allocation2 + $0x148] sm:$0xff]
        %v417 = vld [vmem:[#allocation2 + $0x150] sm:$0xff]
        %v418 = vld [vmem:[#allocation2 + $0x158] sm:$0xff]
        %v419 = vld [vmem:[#allocation2 + $0x160] sm:$0xff]
        %v420 = vld [vmem:[#allocation2 + $0x168] sm:$0xff]
        %v421 = vld [vmem:[#allocation2 + $0x170] sm:$0xff]
        %v422 = vld [vmem:[#allocation2 + $0x178] sm:$0xff]
        %v423 = vld [vmem:[#allocation2 + $0x180] sm:$0xff]
        %v424 = vld [vmem:[#allocation2 + $0x188] sm:$0xff]
        %v425 = vld [vmem:[#allocation2 + $0x190] sm:$0xff]
        %v426 = vld [vmem:[#allocation2 + $0x198] sm:$0xff]
        %v427 = vld [vmem:[#allocation2 + $0x1a0] sm:$0xff]
        %v428 = vld [vmem:[#allocation2 + $0x1a8] sm:$0xff]
        %v429 = vld [vmem:[#allocation2 + $0x1b0] sm:$0xff]
        %v430 = vld [vmem:[#allocation2 + $0x1b8] sm:$0xff]
        %v431 = vld [vmem:[#allocation2 + $0x1c0] sm:$0xff]
        %v432 = vld [vmem:[#allocation2 + $0x1c8] sm:$0xff]
        %v433 = vld [vmem:[#allocation2 + $0x1d0] sm:$0xff]
        %v434 = vld [vmem:[#allocation2 + $0x1d8] sm:$0xff]
        %v435 = vld [vmem:[#allocation2 + $0x1e0] sm:$0xff]
        %v436 = vld [vmem:[#allocation2 + $0x1e8] sm:$0xff]
        %v437 = vld [vmem:[#allocation2 + $0x1f0] sm:$0xff]
        %v438 = vld [vmem:[#allocation2 + $0x1f8] sm:$0xff]
        %v439 = vld [vmem:[%s246] sm:$0xff]
        %v440 = vld [vmem:[%s246 + $0x8] sm:$0xff]
        %v441 = vld [vmem:[%s246 + $0x10] sm:$0xff]
        %v442 = vld [vmem:[%s246 + $0x18] sm:$0xff]
        %v443 = vld [vmem:[%s246 + $0x20] sm:$0xff]
        %v444 = vld [vmem:[%s246 + $0x28] sm:$0xff]
        %v445 = vld [vmem:[%s246 + $0x30] sm:$0xff]
        %v446 = vld [vmem:[%s246 + $0x38] sm:$0xff]
        %v447 = vld [vmem:[%s246 + $0x40] sm:$0xff]
        %v448 = vld [vmem:[%s246 + $0x48] sm:$0xff]
        %v449 = vld [vmem:[%s246 + $0x50] sm:$0xff]
        %v450 = vld [vmem:[%s246 + $0x58] sm:$0xff]
        %v451 = vld [vmem:[%s246 + $0x60] sm:$0xff]
        %v452 = vld [vmem:[%s246 + $0x68] sm:$0xff]
        %v453 = vld [vmem:[%s246 + $0x70] sm:$0xff]
        %v454 = vld [vmem:[%s246 + $0x78] sm:$0xff]
        %v455 = vld [vmem:[%s246 + $0x80] sm:$0xff]
        %v456 = vld [vmem:[%s246 + $0x88] sm:$0xff]
        %v457 = vld [vmem:[%s246 + $0x90] sm:$0xff]
        %v458 = vld [vmem:[%s246 + $0x98] sm:$0xff]
        %v459 = vld [vmem:[%s246 + $0xa0] sm:$0xff]
        %v460 = vld [vmem:[%s246 + $0xa8] sm:$0xff]
        %v461 = vld [vmem:[%s246 + $0xb0] sm:$0xff]
        %v462 = vld [vmem:[%s246 + $0xb8] sm:$0xff]
        %v463 = vld [vmem:[%s246 + $0xc0] sm:$0xff]
        %v464 = vld [vmem:[%s246 + $0xc8] sm:$0xff]
        %v465 = vld [vmem:[%s246 + $0xd0] sm:$0xff]
        %v466 = vld [vmem:[%s246 + $0xd8] sm:$0xff]
        %v467 = vld [vmem:[%s246 + $0xe0] sm:$0xff]
        %v468 = vld [vmem:[%s246 + $0xe8] sm:$0xff]
        %v469 = vld [vmem:[%s246 + $0xf0] sm:$0xff]
        %v470 = vld [vmem:[%s246 + $0xf8] sm:$0xff]
        %v471 = vld [vmem:[%s246 + $0x100] sm:$0xff]
        %v472 = vld [vmem:[%s246 + $0x108] sm:$0xff]
        %v473 = vld [vmem:[%s246 + $0x110] sm:$0xff]
        %v474 = vld [vmem:[%s246 + $0x118] sm:$0xff]
        %v475 = vld [vmem:[%s246 + $0x120] sm:$0xff]
        %v476 = vld [vmem:[%s246 + $0x128] sm:$0xff]
        %v477 = vld [vmem:[%s246 + $0x130] sm:$0xff]
        %v478 = vld [vmem:[%s246 + $0x138] sm:$0xff]
        %v479 = vld [vmem:[%s246 + $0x140] sm:$0xff]
        %v480 = vld [vmem:[%s246 + $0x148] sm:$0xff]
        %v481 = vld [vmem:[%s246 + $0x150] sm:$0xff]
        %v482 = vld [vmem:[%s246 + $0x158] sm:$0xff]
        %v483 = vld [vmem:[%s246 + $0x160] sm:$0xff]
        %v484 = vld [vmem:[%s246 + $0x168] sm:$0xff]
        %v485 = vld [vmem:[%s246 + $0x170] sm:$0xff]
        %v486 = vld [vmem:[%s246 + $0x178] sm:$0xff]
        %v487 = vld [vmem:[%s246 + $0x180] sm:$0xff]
        %v488 = vld [vmem:[%s246 + $0x188] sm:$0xff]
        %v489 = vld [vmem:[%s246 + $0x190] sm:$0xff]
        %v490 = vld [vmem:[%s246 + $0x198] sm:$0xff]
        %v491 = vld [vmem:[%s246 + $0x1a0] sm:$0xff]
        %v492 = vld [vmem:[%s246 + $0x1a8] sm:$0xff]
        %v493 = vld [vmem:[%s246 + $0x1b0] sm:$0xff]
        %v494 = vld [vmem:[%s246 + $0x1b8] sm:$0xff]
        %v495 = vld [vmem:[%s246 + $0x1c0] sm:$0xff]
        %v496 = vld [vmem:[%s246 + $0x1c8] sm:$0xff]
        %v497 = vld [vmem:[%s246 + $0x1d0] sm:$0xff]
        %v498 = vld [vmem:[%s246 + $0x1d8] sm:$0xff]
        %v499 = vld [vmem:[%s246 + $0x1e0] sm:$0xff]
        %v500 = vld [vmem:[%s246 + $0x1e8] sm:$0xff]
        %v501 = vld [vmem:[%s246 + $0x1f0] sm:$0xff]
        %v502 = vld [vmem:[%s246 + $0x1f8] sm:$0xff]
        %v503 = vld [vmem:[%s246 + $0x200] sm:$0xff]
        %v504 = vld [vmem:[%s246 + $0x208] sm:$0xff]
        %v505 = vld [vmem:[%s246 + $0x210] sm:$0xff]
        %v506 = vld [vmem:[%s246 + $0x218] sm:$0xff]
        %v507 = vld [vmem:[%s246 + $0x220] sm:$0xff]
        %v508 = vld [vmem:[%s246 + $0x228] sm:$0xff]
        %v509 = vld [vmem:[%s246 + $0x230] sm:$0xff]
        %v510 = vld [vmem:[%s246 + $0x238] sm:$0xff]
        %v511 = vld [vmem:[%s246 + $0x240] sm:$0xff]
        %v512 = vld [vmem:[%s246 + $0x248] sm:$0xff]
        %v513 = vld [vmem:[%s246 + $0x250] sm:$0xff]
        %v514 = vld [vmem:[%s246 + $0x258] sm:$0xff]
        %v515 = vld [vmem:[%s246 + $0x260] sm:$0xff]
        %v516 = vld [vmem:[%s246 + $0x268] sm:$0xff]
        %v517 = vld [vmem:[%s246 + $0x270] sm:$0xff]
        %v518 = vld [vmem:[%s246 + $0x278] sm:$0xff]
        %v519 = vld [vmem:[%s246 + $0x280] sm:$0xff]
        %v520 = vld [vmem:[%s246 + $0x288] sm:$0xff]
        %v521 = vld [vmem:[%s246 + $0x290] sm:$0xff]
        %v522 = vld [vmem:[%s246 + $0x298] sm:$0xff]
        %v523 = vld [vmem:[%s246 + $0x2a0] sm:$0xff]
        %v524 = vld [vmem:[%s246 + $0x2a8] sm:$0xff]
        %v525 = vld [vmem:[%s246 + $0x2b0] sm:$0xff]
        %v526 = vld [vmem:[%s246 + $0x2b8] sm:$0xff]
        %v527 = vld [vmem:[%s246 + $0x2c0] sm:$0xff]
        %v528 = vld [vmem:[%s246 + $0x2c8] sm:$0xff]
        %v529 = vld [vmem:[%s246 + $0x2d0] sm:$0xff]
        %v530 = vld [vmem:[%s246 + $0x2d8] sm:$0xff]
        %v531 = vld [vmem:[%s246 + $0x2e0] sm:$0xff]
        %v532 = vld [vmem:[%s246 + $0x2e8] sm:$0xff]
        %v533 = vld [vmem:[%s246 + $0x2f0] sm:$0xff]
        %v534 = vld [vmem:[%s246 + $0x2f8] sm:$0xff]
        %v535 = vld [vmem:[%s246 + $0x300] sm:$0xff]
        %v536 = vld [vmem:[%s246 + $0x308] sm:$0xff]
        %v537 = vld [vmem:[%s246 + $0x310] sm:$0xff]
        %v538 = vld [vmem:[%s246 + $0x318] sm:$0xff]
        %v539 = vld [vmem:[%s246 + $0x320] sm:$0xff]
        %v540 = vld [vmem:[%s246 + $0x328] sm:$0xff]
        %v541 = vld [vmem:[%s246 + $0x330] sm:$0xff]
        %v542 = vld [vmem:[%s246 + $0x338] sm:$0xff]
        %v543 = vld [vmem:[%s246 + $0x340] sm:$0xff]
        %v544 = vld [vmem:[%s246 + $0x348] sm:$0xff]
        %v545 = vld [vmem:[%s246 + $0x350] sm:$0xff]
        %v546 = vld [vmem:[%s246 + $0x358] sm:$0xff]
        %v547 = vld [vmem:[%s246 + $0x360] sm:$0xff]
        %v548 = vld [vmem:[%s246 + $0x368] sm:$0xff]
        %v549 = vld [vmem:[%s246 + $0x370] sm:$0xff]
        %v550 = vld [vmem:[%s246 + $0x378] sm:$0xff]
        %v551 = vld [vmem:[%s246 + $0x380] sm:$0xff]
        %v552 = vld [vmem:[%s246 + $0x388] sm:$0xff]
        %v553 = vld [vmem:[%s246 + $0x390] sm:$0xff]
        %v554 = vld [vmem:[%s246 + $0x398] sm:$0xff]
        %v555 = vld [vmem:[%s246 + $0x3a0] sm:$0xff]
        %v556 = vld [vmem:[%s246 + $0x3a8] sm:$0xff]
        %v557 = vld [vmem:[%s246 + $0x3b0] sm:$0xff]
        %v558 = vld [vmem:[%s246 + $0x3b8] sm:$0xff]
        %v559 = vld [vmem:[%s246 + $0x3c0] sm:$0xff]
        %v560 = vld [vmem:[%s246 + $0x3c8] sm:$0xff]
        %v561 = vld [vmem:[%s246 + $0x3d0] sm:$0xff]
        %v562 = vld [vmem:[%s246 + $0x3d8] sm:$0xff]
        %v563 = vld [vmem:[%s246 + $0x3e0] sm:$0xff]
        %v564 = vld [vmem:[%s246 + $0x3e8] sm:$0xff]
        %v565 = vld [vmem:[%s246 + $0x3f0] sm:$0xff]
        %v566 = vld [vmem:[%s246 + $0x3f8] sm:$0xff]
        %v567 = vld [vmem:[%s256] sm:$0xff]
        %v568 = vld [vmem:[%s256 + $0x8] sm:$0xff]
        %v569 = vld [vmem:[%s256 + $0x10] sm:$0xff]
        %v570 = vld [vmem:[%s256 + $0x18] sm:$0xff]
        %v571 = vld [vmem:[%s256 + $0x20] sm:$0xff]
        %v572 = vld [vmem:[%s256 + $0x28] sm:$0xff]
        %v573 = vld [vmem:[%s256 + $0x30] sm:$0xff]
        %v574 = vld [vmem:[%s256 + $0x38] sm:$0xff]
        %v575 = vld [vmem:[%s256 + $0x40] sm:$0xff]
        %v576 = vld [vmem:[%s256 + $0x48] sm:$0xff]
        %v577 = vld [vmem:[%s256 + $0x50] sm:$0xff]
        %v578 = vld [vmem:[%s256 + $0x58] sm:$0xff]
        %v579 = vld [vmem:[%s256 + $0x60] sm:$0xff]
        %v580 = vld [vmem:[%s256 + $0x68] sm:$0xff]
        %v581 = vld [vmem:[%s256 + $0x70] sm:$0xff]
        %v582 = vld [vmem:[%s256 + $0x78] sm:$0xff]
        %v583 = vld [vmem:[%s256 + $0x80] sm:$0xff]
        %v584 = vld [vmem:[%s256 + $0x88] sm:$0xff]
        %v585 = vld [vmem:[%s256 + $0x90] sm:$0xff]
        %v586 = vld [vmem:[%s256 + $0x98] sm:$0xff]
        %v587 = vld [vmem:[%s256 + $0xa0] sm:$0xff]
        %v588 = vld [vmem:[%s256 + $0xa8] sm:$0xff]
        %v589 = vld [vmem:[%s256 + $0xb0] sm:$0xff]
        %v590 = vld [vmem:[%s256 + $0xb8] sm:$0xff]
        %v591 = vld [vmem:[%s256 + $0xc0] sm:$0xff]
        %v592 = vld [vmem:[%s256 + $0xc8] sm:$0xff]
        %v593 = vld [vmem:[%s256 + $0xd0] sm:$0xff]
        %v594 = vld [vmem:[%s256 + $0xd8] sm:$0xff]
        %v595 = vld [vmem:[%s256 + $0xe0] sm:$0xff]
        %v596 = vld [vmem:[%s256 + $0xe8] sm:$0xff]
        %v597 = vld [vmem:[%s256 + $0xf0] sm:$0xff]
        %v598 = vld [vmem:[%s256 + $0xf8] sm:$0xff]
        %v599 = vld [vmem:[%s256 + $0x100] sm:$0xff]
        %v600 = vld [vmem:[%s256 + $0x108] sm:$0xff]
        %v601 = vld [vmem:[%s256 + $0x110] sm:$0xff]
        %v602 = vld [vmem:[%s256 + $0x118] sm:$0xff]
        %v603 = vld [vmem:[%s256 + $0x120] sm:$0xff]
        %v604 = vld [vmem:[%s256 + $0x128] sm:$0xff]
        %v605 = vld [vmem:[%s256 + $0x130] sm:$0xff]
        %v606 = vld [vmem:[%s256 + $0x138] sm:$0xff]
        %v607 = vld [vmem:[%s256 + $0x140] sm:$0xff]
        %v608 = vld [vmem:[%s256 + $0x148] sm:$0xff]
        %v609 = vld [vmem:[%s256 + $0x150] sm:$0xff]
        %v610 = vld [vmem:[%s256 + $0x158] sm:$0xff]
        %v611 = vld [vmem:[%s256 + $0x160] sm:$0xff]
        %v612 = vld [vmem:[%s256 + $0x168] sm:$0xff]
        %v613 = vld [vmem:[%s256 + $0x170] sm:$0xff]
        %v614 = vld [vmem:[%s256 + $0x178] sm:$0xff]
        %v615 = vld [vmem:[%s256 + $0x180] sm:$0xff]
        %v616 = vld [vmem:[%s256 + $0x188] sm:$0xff]
        %v617 = vld [vmem:[%s256 + $0x190] sm:$0xff]
        %v618 = vld [vmem:[%s256 + $0x198] sm:$0xff]
        %v619 = vld [vmem:[%s256 + $0x1a0] sm:$0xff]
        %v620 = vld [vmem:[%s256 + $0x1a8] sm:$0xff]
        %v621 = vld [vmem:[%s256 + $0x1b0] sm:$0xff]
        %v622 = vld [vmem:[%s256 + $0x1b8] sm:$0xff]
        %v623 = vld [vmem:[%s256 + $0x1c0] sm:$0xff]
        %v624 = vld [vmem:[%s256 + $0x1c8] sm:$0xff]
        %v625 = vld [vmem:[%s256 + $0x1d0] sm:$0xff]
        %v626 = vld [vmem:[%s256 + $0x1d8] sm:$0xff]
        %v627 = vld [vmem:[%s256 + $0x1e0] sm:$0xff]
        %v628 = vld [vmem:[%s256 + $0x1e8] sm:$0xff]
        %v629 = vld [vmem:[%s256 + $0x1f0] sm:$0xff]
        %v630 = vld [vmem:[%s256 + $0x1f8] sm:$0xff]
        %v631 = vld [vmem:[%s256 + $0x200] sm:$0xff]
        %v632 = vld [vmem:[%s256 + $0x208] sm:$0xff]
        %v633 = vld [vmem:[%s256 + $0x210] sm:$0xff]
        %v634 = vld [vmem:[%s256 + $0x218] sm:$0xff]
        %v635 = vld [vmem:[%s256 + $0x220] sm:$0xff]
        %v636 = vld [vmem:[%s256 + $0x228] sm:$0xff]
        %v637 = vld [vmem:[%s256 + $0x230] sm:$0xff]
        %v638 = vld [vmem:[%s256 + $0x238] sm:$0xff]
        %v639 = vld [vmem:[%s256 + $0x240] sm:$0xff]
        %v640 = vld [vmem:[%s256 + $0x248] sm:$0xff]
        %v641 = vld [vmem:[%s256 + $0x250] sm:$0xff]
        %v642 = vld [vmem:[%s256 + $0x258] sm:$0xff]
        %v643 = vld [vmem:[%s256 + $0x260] sm:$0xff]
        %v644 = vld [vmem:[%s256 + $0x268] sm:$0xff]
        %v645 = vld [vmem:[%s256 + $0x270] sm:$0xff]
        %v646 = vld [vmem:[%s256 + $0x278] sm:$0xff]
        %v647 = vld [vmem:[%s256 + $0x280] sm:$0xff]
        %v648 = vld [vmem:[%s256 + $0x288] sm:$0xff]
        %v649 = vld [vmem:[%s256 + $0x290] sm:$0xff]
        %v650 = vld [vmem:[%s256 + $0x298] sm:$0xff]
        %v651 = vld [vmem:[%s256 + $0x2a0] sm:$0xff]
        %v652 = vld [vmem:[%s256 + $0x2a8] sm:$0xff]
        %v653 = vld [vmem:[%s256 + $0x2b0] sm:$0xff]
        %v654 = vld [vmem:[%s256 + $0x2b8] sm:$0xff]
        %v655 = vld [vmem:[%s256 + $0x2c0] sm:$0xff]
        %v656 = vld [vmem:[%s256 + $0x2c8] sm:$0xff]
        %v657 = vld [vmem:[%s256 + $0x2d0] sm:$0xff]
        %v658 = vld [vmem:[%s256 + $0x2d8] sm:$0xff]
        %v659 = vld [vmem:[%s256 + $0x2e0] sm:$0xff]
        %v660 = vld [vmem:[%s256 + $0x2e8] sm:$0xff]
        %v661 = vld [vmem:[%s256 + $0x2f0] sm:$0xff]
        %v662 = vld [vmem:[%s256 + $0x2f8] sm:$0xff]
        %v663 = vld [vmem:[%s256 + $0x300] sm:$0xff]
        %v664 = vld [vmem:[%s256 + $0x308] sm:$0xff]
        %v665 = vld [vmem:[%s256 + $0x310] sm:$0xff]
        %v666 = vld [vmem:[%s256 + $0x318] sm:$0xff]
        %v667 = vld [vmem:[%s256 + $0x320] sm:$0xff]
        %v668 = vld [vmem:[%s256 + $0x328] sm:$0xff]
        %v669 = vld [vmem:[%s256 + $0x330] sm:$0xff]
        %v670 = vld [vmem:[%s256 + $0x338] sm:$0xff]
        %v671 = vld [vmem:[%s256 + $0x340] sm:$0xff]
        %v672 = vld [vmem:[%s256 + $0x348] sm:$0xff]
        %v673 = vld [vmem:[%s256 + $0x350] sm:$0xff]
        %v674 = vld [vmem:[%s256 + $0x358] sm:$0xff]
        %v675 = vld [vmem:[%s256 + $0x360] sm:$0xff]
        %v676 = vld [vmem:[%s256 + $0x368] sm:$0xff]
        %v677 = vld [vmem:[%s256 + $0x370] sm:$0xff]
        %v678 = vld [vmem:[%s256 + $0x378] sm:$0xff]
        %v679 = vld [vmem:[%s256 + $0x380] sm:$0xff]
        %v680 = vld [vmem:[%s256 + $0x388] sm:$0xff]
        %v681 = vld [vmem:[%s256 + $0x390] sm:$0xff]
        %v682 = vld [vmem:[%s256 + $0x398] sm:$0xff]
        %v683 = vld [vmem:[%s256 + $0x3a0] sm:$0xff]
        %v684 = vld [vmem:[%s256 + $0x3a8] sm:$0xff]
        %v685 = vld [vmem:[%s256 + $0x3b0] sm:$0xff]
        %v686 = vld [vmem:[%s256 + $0x3b8] sm:$0xff]
        %v687 = vld [vmem:[%s256 + $0x3c0] sm:$0xff]
        %v688 = vld [vmem:[%s256 + $0x3c8] sm:$0xff]
        %v689 = vld [vmem:[%s256 + $0x3d0] sm:$0xff]
        %v690 = vld [vmem:[%s256 + $0x3d8] sm:$0xff]
        %v691 = vld [vmem:[%s256 + $0x3e0] sm:$0xff]
        %v692 = vld [vmem:[%s256 + $0x3e8] sm:$0xff]
        %v693 = vld [vmem:[%s256 + $0x3f0] sm:$0xff]
        %v694 = vld [vmem:[%s256 + $0x3f8] sm:$0xff]
        %695 = vmatpush.msra.mxu0 %v597
        %696 = vmatpush.msra.mxu0 %v595
        %697 = vmatpush.msra.mxu0 %v593
        %698 = vmatpush.msra.mxu0 %v591
        %699 = vmatpush.msra.mxu0 %v589
        %700 = vmatpush.msra.mxu0 %v587
        %701 = vmatpush.msra.mxu0 %v585
        %702 = vmatpush.msra.mxu0 %v583
        %703 = vmatpush.msra.mxu0 %v581
        %704 = vmatpush.msra.mxu0 %v579
        %705 = vmatpush.msra.mxu0 %v577
        %706 = vmatpush.msra.mxu0 %v575
        %707 = vmatpush.msra.mxu0 %v573
        %708 = vmatpush.msra.mxu0 %v571
        %709 = vmatpush.msra.mxu0 %v569
        %710 = vmatpush.msra.mxu0 %v567
        %711 = vmatmul.f32.gmra.mxu0 %v439
        %v712 = vpop.f32.mrf.mxu0
        %v713 = vadd.f32 0.0, %v712
        %714 = vmatmul.f32.gmra.mxu0 %v443
        %v715 = vpop.f32.mrf.mxu0
        %v716 = vadd.f32 0.0, %v715
        %717 = vmatmul.f32.gmra.mxu0 %v447
        %v718 = vpop.f32.mrf.mxu0
        %v719 = vadd.f32 0.0, %v718
        %720 = vmatmul.f32.gmra.mxu0 %v451
        %v721 = vpop.f32.mrf.mxu0
        %v722 = vadd.f32 0.0, %v721
        %723 = vmatmul.f32.gmra.mxu0 %v455
        %v724 = vpop.f32.mrf.mxu0
        %v725 = vadd.f32 0.0, %v724
        %726 = vmatmul.f32.gmra.mxu0 %v459
        %v727 = vpop.f32.mrf.mxu0
        %v728 = vadd.f32 0.0, %v727
        %729 = vmatmul.f32.gmra.mxu0 %v463
        %v730 = vpop.f32.mrf.mxu0
        %v731 = vadd.f32 0.0, %v730
        %732 = vmatmul.f32.gmra.mxu0 %v467
        %v733 = vpop.f32.mrf.mxu0
        %v734 = vadd.f32 0.0, %v733
        %735 = vmatmul.f32.gmra.mxu0 %v471
        %v736 = vpop.f32.mrf.mxu0
        %v737 = vadd.f32 0.0, %v736
        %738 = vmatmul.f32.gmra.mxu0 %v475
        %v739 = vpop.f32.mrf.mxu0
        %v740 = vadd.f32 0.0, %v739
        %741 = vmatmul.f32.gmra.mxu0 %v479
        %v742 = vpop.f32.mrf.mxu0
        %v743 = vadd.f32 0.0, %v742
        %744 = vmatmul.f32.gmra.mxu0 %v483
        %v745 = vpop.f32.mrf.mxu0
        %v746 = vadd.f32 0.0, %v745
        %747 = vmatmul.f32.gmra.mxu0 %v487
        %v748 = vpop.f32.mrf.mxu0
        %v749 = vadd.f32 0.0, %v748
        %750 = vmatmul.f32.gmra.mxu0 %v491
        %v751 = vpop.f32.mrf.mxu0
        %v752 = vadd.f32 0.0, %v751
        %753 = vmatmul.f32.gmra.mxu0 %v495
        %v754 = vpop.f32.mrf.mxu0
        %v755 = vadd.f32 0.0, %v754
        %756 = vmatmul.f32.gmra.mxu0 %v499
        %v757 = vpop.f32.mrf.mxu0
        %v758 = vadd.f32 0.0, %v757
        %759 = vmatmul.f32.gmra.mxu0 %v503
        %v760 = vpop.f32.mrf.mxu0
        %v761 = vadd.f32 0.0, %v760
        %762 = vmatmul.f32.gmra.mxu0 %v507
        %v763 = vpop.f32.mrf.mxu0
        %v764 = vadd.f32 0.0, %v763
        %765 = vmatmul.f32.gmra.mxu0 %v511
        %v766 = vpop.f32.mrf.mxu0
        %v767 = vadd.f32 0.0, %v766
        %768 = vmatmul.f32.gmra.mxu0 %v515
        %v769 = vpop.f32.mrf.mxu0
        %v770 = vadd.f32 0.0, %v769
        %771 = vmatmul.f32.gmra.mxu0 %v519
        %v772 = vpop.f32.mrf.mxu0
        %v773 = vadd.f32 0.0, %v772
        %774 = vmatmul.f32.gmra.mxu0 %v523
        %v775 = vpop.f32.mrf.mxu0
        %v776 = vadd.f32 0.0, %v775
        %777 = vmatmul.f32.gmra.mxu0 %v527
        %v778 = vpop.f32.mrf.mxu0
        %v779 = vadd.f32 0.0, %v778
        %780 = vmatmul.f32.gmra.mxu0 %v531
        %v781 = vpop.f32.mrf.mxu0
        %v782 = vadd.f32 0.0, %v781
        %783 = vmatmul.f32.gmra.mxu0 %v535
        %v784 = vpop.f32.mrf.mxu0
        %v785 = vadd.f32 0.0, %v784
        %786 = vmatmul.f32.gmra.mxu0 %v539
        %v787 = vpop.f32.mrf.mxu0
        %v788 = vadd.f32 0.0, %v787
        %789 = vmatmul.f32.gmra.mxu0 %v543
        %v790 = vpop.f32.mrf.mxu0
        %v791 = vadd.f32 0.0, %v790
        %792 = vmatmul.f32.gmra.mxu0 %v547
        %v793 = vpop.f32.mrf.mxu0
        %v794 = vadd.f32 0.0, %v793
        %795 = vmatmul.f32.gmra.mxu0 %v551
        %v796 = vpop.f32.mrf.mxu0
        %v797 = vadd.f32 0.0, %v796
        %798 = vmatmul.f32.gmra.mxu0 %v555
        %v799 = vpop.f32.mrf.mxu0
        %v800 = vadd.f32 0.0, %v799
        %801 = vmatmul.f32.gmra.mxu0 %v559
        %v802 = vpop.f32.mrf.mxu0
        %v803 = vadd.f32 0.0, %v802
        %804 = vmatmul.f32.gmra.mxu0 %v563
        %v805 = vpop.f32.mrf.mxu0
        %v806 = vadd.f32 0.0, %v805
        %807 = vdwg.mxu0
        %808 = vmatpush.msra.mxu0 %v629
        %809 = vmatpush.msra.mxu0 %v627
        %810 = vmatpush.msra.mxu0 %v625
        %811 = vmatpush.msra.mxu0 %v623
        %812 = vmatpush.msra.mxu0 %v621
        %813 = vmatpush.msra.mxu0 %v619
        %814 = vmatpush.msra.mxu0 %v617
        %815 = vmatpush.msra.mxu0 %v615
        %816 = vmatpush.msra.mxu0 %v613
        %817 = vmatpush.msra.mxu0 %v611
        %818 = vmatpush.msra.mxu0 %v609
        %819 = vmatpush.msra.mxu0 %v607
        %820 = vmatpush.msra.mxu0 %v605
        %821 = vmatpush.msra.mxu0 %v603
        %822 = vmatpush.msra.mxu0 %v601
        %823 = vmatpush.msra.mxu0 %v599
        %824 = vmatmul.f32.gmra.mxu0 %v440
        %v825 = vpop.f32.mrf.mxu0
        %v826 = vadd.f32 %v713, %v825
        %827 = vmatmul.f32.gmra.mxu0 %v444
        %v828 = vpop.f32.mrf.mxu0
        %v829 = vadd.f32 %v716, %v828
        %830 = vmatmul.f32.gmra.mxu0 %v448
        %v831 = vpop.f32.mrf.mxu0
        %v832 = vadd.f32 %v719, %v831
        %833 = vmatmul.f32.gmra.mxu0 %v452
        %v834 = vpop.f32.mrf.mxu0
        %v835 = vadd.f32 %v722, %v834
        %836 = vmatmul.f32.gmra.mxu0 %v456
        %v837 = vpop.f32.mrf.mxu0
        %v838 = vadd.f32 %v725, %v837
        %839 = vmatmul.f32.gmra.mxu0 %v460
        %v840 = vpop.f32.mrf.mxu0
        %v841 = vadd.f32 %v728, %v840
        %842 = vmatmul.f32.gmra.mxu0 %v464
        %v843 = vpop.f32.mrf.mxu0
        %v844 = vadd.f32 %v731, %v843
        %845 = vmatmul.f32.gmra.mxu0 %v468
        %v846 = vpop.f32.mrf.mxu0
        %v847 = vadd.f32 %v734, %v846
        %848 = vmatmul.f32.gmra.mxu0 %v472
        %v849 = vpop.f32.mrf.mxu0
        %v850 = vadd.f32 %v737, %v849
        %851 = vmatmul.f32.gmra.mxu0 %v476
        %v852 = vpop.f32.mrf.mxu0
        %v853 = vadd.f32 %v740, %v852
        %854 = vmatmul.f32.gmra.mxu0 %v480
        %v855 = vpop.f32.mrf.mxu0
        %v856 = vadd.f32 %v743, %v855
        %857 = vmatmul.f32.gmra.mxu0 %v484
        %v858 = vpop.f32.mrf.mxu0
        %v859 = vadd.f32 %v746, %v858
        %860 = vmatmul.f32.gmra.mxu0 %v488
        %v861 = vpop.f32.mrf.mxu0
        %v862 = vadd.f32 %v749, %v861
        %863 = vmatmul.f32.gmra.mxu0 %v492
        %v864 = vpop.f32.mrf.mxu0
        %v865 = vadd.f32 %v752, %v864
        %866 = vmatmul.f32.gmra.mxu0 %v496
        %v867 = vpop.f32.mrf.mxu0
        %v868 = vadd.f32 %v755, %v867
        %869 = vmatmul.f32.gmra.mxu0 %v500
        %v870 = vpop.f32.mrf.mxu0
        %v871 = vadd.f32 %v758, %v870
        %872 = vmatmul.f32.gmra.mxu0 %v504
        %v873 = vpop.f32.mrf.mxu0
        %v874 = vadd.f32 %v761, %v873
        %875 = vmatmul.f32.gmra.mxu0 %v508
        %v876 = vpop.f32.mrf.mxu0
        %v877 = vadd.f32 %v764, %v876
        %878 = vmatmul.f32.gmra.mxu0 %v512
        %v879 = vpop.f32.mrf.mxu0
        %v880 = vadd.f32 %v767, %v879
        %881 = vmatmul.f32.gmra.mxu0 %v516
        %v882 = vpop.f32.mrf.mxu0
        %v883 = vadd.f32 %v770, %v882
        %884 = vmatmul.f32.gmra.mxu0 %v520
        %v885 = vpop.f32.mrf.mxu0
        %v886 = vadd.f32 %v773, %v885
        %887 = vmatmul.f32.gmra.mxu0 %v524
        %v888 = vpop.f32.mrf.mxu0
        %v889 = vadd.f32 %v776, %v888
        %890 = vmatmul.f32.gmra.mxu0 %v528
        %v891 = vpop.f32.mrf.mxu0
        %v892 = vadd.f32 %v779, %v891
        %893 = vmatmul.f32.gmra.mxu0 %v532
        %v894 = vpop.f32.mrf.mxu0
        %v895 = vadd.f32 %v782, %v894
        %896 = vmatmul.f32.gmra.mxu0 %v536
        %v897 = vpop.f32.mrf.mxu0
        %v898 = vadd.f32 %v785, %v897
        %899 = vmatmul.f32.gmra.mxu0 %v540
        %v900 = vpop.f32.mrf.mxu0
        %v901 = vadd.f32 %v788, %v900
        %902 = vmatmul.f32.gmra.mxu0 %v544
        %v903 = vpop.f32.mrf.mxu0
        %v904 = vadd.f32 %v791, %v903
        %905 = vmatmul.f32.gmra.mxu0 %v548
        %v906 = vpop.f32.mrf.mxu0
        %v907 = vadd.f32 %v794, %v906
        %908 = vmatmul.f32.gmra.mxu0 %v552
        %v909 = vpop.f32.mrf.mxu0
        %v910 = vadd.f32 %v797, %v909
        %911 = vmatmul.f32.gmra.mxu0 %v556
        %v912 = vpop.f32.mrf.mxu0
        %v913 = vadd.f32 %v800, %v912
        %914 = vmatmul.f32.gmra.mxu0 %v560
        %v915 = vpop.f32.mrf.mxu0
        %v916 = vadd.f32 %v803, %v915
        %917 = vmatmul.f32.gmra.mxu0 %v564
        %v918 = vpop.f32.mrf.mxu0
        %v919 = vadd.f32 %v806, %v918
        %920 = vdwg.mxu0
        %921 = vmatpush.msra.mxu0 %v661
        %922 = vmatpush.msra.mxu0 %v659
        %923 = vmatpush.msra.mxu0 %v657
        %924 = vmatpush.msra.mxu0 %v655
        %925 = vmatpush.msra.mxu0 %v653
        %926 = vmatpush.msra.mxu0 %v651
        %927 = vmatpush.msra.mxu0 %v649
        %928 = vmatpush.msra.mxu0 %v647
        %929 = vmatpush.msra.mxu0 %v645
        %930 = vmatpush.msra.mxu0 %v643
        %931 = vmatpush.msra.mxu0 %v641
        %932 = vmatpush.msra.mxu0 %v639
        %933 = vmatpush.msra.mxu0 %v637
        %934 = vmatpush.msra.mxu0 %v635
        %935 = vmatpush.msra.mxu0 %v633
        %936 = vmatpush.msra.mxu0 %v631
        %937 = vmatmul.f32.gmra.mxu0 %v441
        %v938 = vpop.f32.mrf.mxu0
        %v939 = vadd.f32 %v826, %v938
        %940 = vmatmul.f32.gmra.mxu0 %v445
        %v941 = vpop.f32.mrf.mxu0
        %v942 = vadd.f32 %v829, %v941
        %943 = vmatmul.f32.gmra.mxu0 %v449
        %v944 = vpop.f32.mrf.mxu0
        %v945 = vadd.f32 %v832, %v944
        %946 = vmatmul.f32.gmra.mxu0 %v453
        %v947 = vpop.f32.mrf.mxu0
        %v948 = vadd.f32 %v835, %v947
        %949 = vmatmul.f32.gmra.mxu0 %v457
        %v950 = vpop.f32.mrf.mxu0
        %v951 = vadd.f32 %v838, %v950
        %952 = vmatmul.f32.gmra.mxu0 %v461
        %v953 = vpop.f32.mrf.mxu0
        %v954 = vadd.f32 %v841, %v953
        %955 = vmatmul.f32.gmra.mxu0 %v465
        %v956 = vpop.f32.mrf.mxu0
        %v957 = vadd.f32 %v844, %v956
        %958 = vmatmul.f32.gmra.mxu0 %v469
        %v959 = vpop.f32.mrf.mxu0
        %v960 = vadd.f32 %v847, %v959
        %961 = vmatmul.f32.gmra.mxu0 %v473
        %v962 = vpop.f32.mrf.mxu0
        %v963 = vadd.f32 %v850, %v962
        %964 = vmatmul.f32.gmra.mxu0 %v477
        %v965 = vpop.f32.mrf.mxu0
        %v966 = vadd.f32 %v853, %v965
        %967 = vmatmul.f32.gmra.mxu0 %v481
        %v968 = vpop.f32.mrf.mxu0
        %v969 = vadd.f32 %v856, %v968
        %970 = vmatmul.f32.gmra.mxu0 %v485
        %v971 = vpop.f32.mrf.mxu0
        %v972 = vadd.f32 %v859, %v971
        %973 = vmatmul.f32.gmra.mxu0 %v489
        %v974 = vpop.f32.mrf.mxu0
        %v975 = vadd.f32 %v862, %v974
        %976 = vmatmul.f32.gmra.mxu0 %v493
        %v977 = vpop.f32.mrf.mxu0
        %v978 = vadd.f32 %v865, %v977
        %979 = vmatmul.f32.gmra.mxu0 %v497
        %v980 = vpop.f32.mrf.mxu0
        %v981 = vadd.f32 %v868, %v980
        %982 = vmatmul.f32.gmra.mxu0 %v501
        %v983 = vpop.f32.mrf.mxu0
        %v984 = vadd.f32 %v871, %v983
        %985 = vmatmul.f32.gmra.mxu0 %v505
        %v986 = vpop.f32.mrf.mxu0
        %v987 = vadd.f32 %v874, %v986
        %988 = vmatmul.f32.gmra.mxu0 %v509
        %v989 = vpop.f32.mrf.mxu0
        %v990 = vadd.f32 %v877, %v989
        %991 = vmatmul.f32.gmra.mxu0 %v513
        %v992 = vpop.f32.mrf.mxu0
        %v993 = vadd.f32 %v880, %v992
        %994 = vmatmul.f32.gmra.mxu0 %v517
        %v995 = vpop.f32.mrf.mxu0
        %v996 = vadd.f32 %v883, %v995
        %997 = vmatmul.f32.gmra.mxu0 %v521
        %v998 = vpop.f32.mrf.mxu0
        %v999 = vadd.f32 %v886, %v998
        %1000 = vmatmul.f32.gmra.mxu0 %v525
        %v1001 = vpop.f32.mrf.mxu0
        %v1002 = vadd.f32 %v889, %v1001
        %1003 = vmatmul.f32.gmra.mxu0 %v529
        %v1004 = vpop.f32.mrf.mxu0
        %v1005 = vadd.f32 %v892, %v1004
        %1006 = vmatmul.f32.gmra.mxu0 %v533
        %v1007 = vpop.f32.mrf.mxu0
        %v1008 = vadd.f32 %v895, %v1007
        %1009 = vmatmul.f32.gmra.mxu0 %v537
        %v1010 = vpop.f32.mrf.mxu0
        %v1011 = vadd.f32 %v898, %v1010
        %1012 = vmatmul.f32.gmra.mxu0 %v541
        %v1013 = vpop.f32.mrf.mxu0
        %v1014 = vadd.f32 %v901, %v1013
        %1015 = vmatmul.f32.gmra.mxu0 %v545
        %v1016 = vpop.f32.mrf.mxu0
        %v1017 = vadd.f32 %v904, %v1016
        %1018 = vmatmul.f32.gmra.mxu0 %v549
        %v1019 = vpop.f32.mrf.mxu0
        %v1020 = vadd.f32 %v907, %v1019
        %1021 = vmatmul.f32.gmra.mxu0 %v553
        %v1022 = vpop.f32.mrf.mxu0
        %v1023 = vadd.f32 %v910, %v1022
        %1024 = vmatmul.f32.gmra.mxu0 %v557
        %v1025 = vpop.f32.mrf.mxu0
        %v1026 = vadd.f32 %v913, %v1025
        %1027 = vmatmul.f32.gmra.mxu0 %v561
        %v1028 = vpop.f32.mrf.mxu0
        %v1029 = vadd.f32 %v916, %v1028
        %1030 = vmatmul.f32.gmra.mxu0 %v565
        %v1031 = vpop.f32.mrf.mxu0
        %v1032 = vadd.f32 %v919, %v1031
        %1033 = vdwg.mxu0
        %1034 = vmatpush.msra.mxu0 %v693
        %1035 = vmatpush.msra.mxu0 %v691
        %1036 = vmatpush.msra.mxu0 %v689
        %1037 = vmatpush.msra.mxu0 %v687
        %1038 = vmatpush.msra.mxu0 %v685
        %1039 = vmatpush.msra.mxu0 %v683
        %1040 = vmatpush.msra.mxu0 %v681
        %1041 = vmatpush.msra.mxu0 %v679
        %1042 = vmatpush.msra.mxu0 %v677
        %1043 = vmatpush.msra.mxu0 %v675
        %1044 = vmatpush.msra.mxu0 %v673
        %1045 = vmatpush.msra.mxu0 %v671
        %1046 = vmatpush.msra.mxu0 %v669
        %1047 = vmatpush.msra.mxu0 %v667
        %1048 = vmatpush.msra.mxu0 %v665
        %1049 = vmatpush.msra.mxu0 %v663
        %1050 = vmatmul.f32.gmra.mxu0 %v442
        %v1051 = vpop.f32.mrf.mxu0
        %v1052 = vadd.f32 %v939, %v1051
        %1053 = vmatmul.f32.gmra.mxu0 %v446
        %v1054 = vpop.f32.mrf.mxu0
        %v1055 = vadd.f32 %v942, %v1054
        %1056 = vmatmul.f32.gmra.mxu0 %v450
        %v1057 = vpop.f32.mrf.mxu0
        %v1058 = vadd.f32 %v945, %v1057
        %1059 = vmatmul.f32.gmra.mxu0 %v454
        %v1060 = vpop.f32.mrf.mxu0
        %v1061 = vadd.f32 %v948, %v1060
        %1062 = vmatmul.f32.gmra.mxu0 %v458
        %v1063 = vpop.f32.mrf.mxu0
        %v1064 = vadd.f32 %v951, %v1063
        %1065 = vmatmul.f32.gmra.mxu0 %v462
        %v1066 = vpop.f32.mrf.mxu0
        %v1067 = vadd.f32 %v954, %v1066
        %1068 = vmatmul.f32.gmra.mxu0 %v466
        %v1069 = vpop.f32.mrf.mxu0
        %v1070 = vadd.f32 %v957, %v1069
        %1071 = vmatmul.f32.gmra.mxu0 %v470
        %v1072 = vpop.f32.mrf.mxu0
        %v1073 = vadd.f32 %v960, %v1072
        %1074 = vmatmul.f32.gmra.mxu0 %v474
        %v1075 = vpop.f32.mrf.mxu0
        %v1076 = vadd.f32 %v963, %v1075
        %1077 = vmatmul.f32.gmra.mxu0 %v478
        %v1078 = vpop.f32.mrf.mxu0
        %v1079 = vadd.f32 %v966, %v1078
        %1080 = vmatmul.f32.gmra.mxu0 %v482
        %v1081 = vpop.f32.mrf.mxu0
        %v1082 = vadd.f32 %v969, %v1081
        %1083 = vmatmul.f32.gmra.mxu0 %v486
        %v1084 = vpop.f32.mrf.mxu0
        %v1085 = vadd.f32 %v972, %v1084
        %1086 = vmatmul.f32.gmra.mxu0 %v490
        %v1087 = vpop.f32.mrf.mxu0
        %v1088 = vadd.f32 %v975, %v1087
        %1089 = vmatmul.f32.gmra.mxu0 %v494
        %v1090 = vpop.f32.mrf.mxu0
        %v1091 = vadd.f32 %v978, %v1090
        %1092 = vmatmul.f32.gmra.mxu0 %v498
        %v1093 = vpop.f32.mrf.mxu0
        %v1094 = vadd.f32 %v981, %v1093
        %1095 = vmatmul.f32.gmra.mxu0 %v502
        %v1096 = vpop.f32.mrf.mxu0
        %v1097 = vadd.f32 %v984, %v1096
        %1098 = vmatmul.f32.gmra.mxu0 %v506
        %v1099 = vpop.f32.mrf.mxu0
        %v1100 = vadd.f32 %v987, %v1099
        %1101 = vmatmul.f32.gmra.mxu0 %v510
        %v1102 = vpop.f32.mrf.mxu0
        %v1103 = vadd.f32 %v990, %v1102
        %1104 = vmatmul.f32.gmra.mxu0 %v514
        %v1105 = vpop.f32.mrf.mxu0
        %v1106 = vadd.f32 %v993, %v1105
        %1107 = vmatmul.f32.gmra.mxu0 %v518
        %v1108 = vpop.f32.mrf.mxu0
        %v1109 = vadd.f32 %v996, %v1108
        %1110 = vmatmul.f32.gmra.mxu0 %v522
        %v1111 = vpop.f32.mrf.mxu0
        %v1112 = vadd.f32 %v999, %v1111
        %1113 = vmatmul.f32.gmra.mxu0 %v526
        %v1114 = vpop.f32.mrf.mxu0
        %v1115 = vadd.f32 %v1002, %v1114
        %1116 = vmatmul.f32.gmra.mxu0 %v530
        %v1117 = vpop.f32.mrf.mxu0
        %v1118 = vadd.f32 %v1005, %v1117
        %1119 = vmatmul.f32.gmra.mxu0 %v534
        %v1120 = vpop.f32.mrf.mxu0
        %v1121 = vadd.f32 %v1008, %v1120
        %1122 = vmatmul.f32.gmra.mxu0 %v538
        %v1123 = vpop.f32.mrf.mxu0
        %v1124 = vadd.f32 %v1011, %v1123
        %1125 = vmatmul.f32.gmra.mxu0 %v542
        %v1126 = vpop.f32.mrf.mxu0
        %v1127 = vadd.f32 %v1014, %v1126
        %1128 = vmatmul.f32.gmra.mxu0 %v546
        %v1129 = vpop.f32.mrf.mxu0
        %v1130 = vadd.f32 %v1017, %v1129
        %1131 = vmatmul.f32.gmra.mxu0 %v550
        %v1132 = vpop.f32.mrf.mxu0
        %v1133 = vadd.f32 %v1020, %v1132
        %1134 = vmatmul.f32.gmra.mxu0 %v554
        %v1135 = vpop.f32.mrf.mxu0
        %v1136 = vadd.f32 %v1023, %v1135
        %1137 = vmatmul.f32.gmra.mxu0 %v558
        %v1138 = vpop.f32.mrf.mxu0
        %v1139 = vadd.f32 %v1026, %v1138
        %1140 = vmatmul.f32.gmra.mxu0 %v562
        %v1141 = vpop.f32.mrf.mxu0
        %v1142 = vadd.f32 %v1029, %v1141
        %1143 = vmatmul.f32.gmra.mxu0 %v566
        %v1144 = vpop.f32.mrf.mxu0
        %v1145 = vadd.f32 %v1032, %v1144
        %1146 = vdwg.mxu0
        %1147 = vmatpush.msra.mxu0 %v598
        %1148 = vmatpush.msra.mxu0 %v596
        %1149 = vmatpush.msra.mxu0 %v594
        %1150 = vmatpush.msra.mxu0 %v592
        %1151 = vmatpush.msra.mxu0 %v590
        %1152 = vmatpush.msra.mxu0 %v588
        %1153 = vmatpush.msra.mxu0 %v586
        %1154 = vmatpush.msra.mxu0 %v584
        %1155 = vmatpush.msra.mxu0 %v582
        %1156 = vmatpush.msra.mxu0 %v580
        %1157 = vmatpush.msra.mxu0 %v578
        %1158 = vmatpush.msra.mxu0 %v576
        %1159 = vmatpush.msra.mxu0 %v574
        %1160 = vmatpush.msra.mxu0 %v572
        %1161 = vmatpush.msra.mxu0 %v570
        %1162 = vmatpush.msra.mxu0 %v568
        %1163 = vmatmul.f32.gmra.mxu0 %v439
        %v1164 = vpop.f32.mrf.mxu0
        %v1165 = vadd.f32 0.0, %v1164
        %1166 = vmatmul.f32.gmra.mxu0 %v443
        %v1167 = vpop.f32.mrf.mxu0
        %v1168 = vadd.f32 0.0, %v1167
        %1169 = vmatmul.f32.gmra.mxu0 %v447
        %v1170 = vpop.f32.mrf.mxu0
        %v1171 = vadd.f32 0.0, %v1170
        %1172 = vmatmul.f32.gmra.mxu0 %v451
        %v1173 = vpop.f32.mrf.mxu0
        %v1174 = vadd.f32 0.0, %v1173
        %1175 = vmatmul.f32.gmra.mxu0 %v455
        %v1176 = vpop.f32.mrf.mxu0
        %v1177 = vadd.f32 0.0, %v1176
        %1178 = vmatmul.f32.gmra.mxu0 %v459
        %v1179 = vpop.f32.mrf.mxu0
        %v1180 = vadd.f32 0.0, %v1179
        %1181 = vmatmul.f32.gmra.mxu0 %v463
        %v1182 = vpop.f32.mrf.mxu0
        %v1183 = vadd.f32 0.0, %v1182
        %1184 = vmatmul.f32.gmra.mxu0 %v467
        %v1185 = vpop.f32.mrf.mxu0
        %v1186 = vadd.f32 0.0, %v1185
        %1187 = vmatmul.f32.gmra.mxu0 %v471
        %v1188 = vpop.f32.mrf.mxu0
        %v1189 = vadd.f32 0.0, %v1188
        %1190 = vmatmul.f32.gmra.mxu0 %v475
        %v1191 = vpop.f32.mrf.mxu0
        %v1192 = vadd.f32 0.0, %v1191
        %1193 = vmatmul.f32.gmra.mxu0 %v479
        %v1194 = vpop.f32.mrf.mxu0
        %v1195 = vadd.f32 0.0, %v1194
        %1196 = vmatmul.f32.gmra.mxu0 %v483
        %v1197 = vpop.f32.mrf.mxu0
        %v1198 = vadd.f32 0.0, %v1197
        %1199 = vmatmul.f32.gmra.mxu0 %v487
        %v1200 = vpop.f32.mrf.mxu0
        %v1201 = vadd.f32 0.0, %v1200
        %1202 = vmatmul.f32.gmra.mxu0 %v491
        %v1203 = vpop.f32.mrf.mxu0
        %v1204 = vadd.f32 0.0, %v1203
        %1205 = vmatmul.f32.gmra.mxu0 %v495
        %v1206 = vpop.f32.mrf.mxu0
        %v1207 = vadd.f32 0.0, %v1206
        %1208 = vmatmul.f32.gmra.mxu0 %v499
        %v1209 = vpop.f32.mrf.mxu0
        %v1210 = vadd.f32 0.0, %v1209
        %1211 = vmatmul.f32.gmra.mxu0 %v503
        %v1212 = vpop.f32.mrf.mxu0
        %v1213 = vadd.f32 0.0, %v1212
        %1214 = vmatmul.f32.gmra.mxu0 %v507
        %v1215 = vpop.f32.mrf.mxu0
        %v1216 = vadd.f32 0.0, %v1215
        %1217 = vmatmul.f32.gmra.mxu0 %v511
        %v1218 = vpop.f32.mrf.mxu0
        %v1219 = vadd.f32 0.0, %v1218
        %1220 = vmatmul.f32.gmra.mxu0 %v515
        %v1221 = vpop.f32.mrf.mxu0
        %v1222 = vadd.f32 0.0, %v1221
        %1223 = vmatmul.f32.gmra.mxu0 %v519
        %v1224 = vpop.f32.mrf.mxu0
        %v1225 = vadd.f32 0.0, %v1224
        %1226 = vmatmul.f32.gmra.mxu0 %v523
        %v1227 = vpop.f32.mrf.mxu0
        %v1228 = vadd.f32 0.0, %v1227
        %1229 = vmatmul.f32.gmra.mxu0 %v527
        %v1230 = vpop.f32.mrf.mxu0
        %v1231 = vadd.f32 0.0, %v1230
        %1232 = vmatmul.f32.gmra.mxu0 %v531
        %v1233 = vpop.f32.mrf.mxu0
        %v1234 = vadd.f32 0.0, %v1233
        %1235 = vmatmul.f32.gmra.mxu0 %v535
        %v1236 = vpop.f32.mrf.mxu0
        %v1237 = vadd.f32 0.0, %v1236
        %1238 = vmatmul.f32.gmra.mxu0 %v539
        %v1239 = vpop.f32.mrf.mxu0
        %v1240 = vadd.f32 0.0, %v1239
        %1241 = vmatmul.f32.gmra.mxu0 %v543
        %v1242 = vpop.f32.mrf.mxu0
        %v1243 = vadd.f32 0.0, %v1242
        %1244 = vmatmul.f32.gmra.mxu0 %v547
        %v1245 = vpop.f32.mrf.mxu0
        %v1246 = vadd.f32 0.0, %v1245
        %1247 = vmatmul.f32.gmra.mxu0 %v551
        %v1248 = vpop.f32.mrf.mxu0
        %v1249 = vadd.f32 0.0, %v1248
        %1250 = vmatmul.f32.gmra.mxu0 %v555
        %v1251 = vpop.f32.mrf.mxu0
        %v1252 = vadd.f32 0.0, %v1251
        %1253 = vmatmul.f32.gmra.mxu0 %v559
        %v1254 = vpop.f32.mrf.mxu0
        %v1255 = vadd.f32 0.0, %v1254
        %1256 = vmatmul.f32.gmra.mxu0 %v563
        %v1257 = vpop.f32.mrf.mxu0
        %v1258 = vadd.f32 0.0, %v1257
        %1259 = vdwg.mxu0
        %1260 = vmatpush.msra.mxu0 %v630
        %1261 = vmatpush.msra.mxu0 %v628
        %1262 = vmatpush.msra.mxu0 %v626
        %1263 = vmatpush.msra.mxu0 %v624
        %1264 = vmatpush.msra.mxu0 %v622
        %1265 = vmatpush.msra.mxu0 %v620
        %1266 = vmatpush.msra.mxu0 %v618
        %1267 = vmatpush.msra.mxu0 %v616
        %1268 = vmatpush.msra.mxu0 %v614
        %1269 = vmatpush.msra.mxu0 %v612
        %1270 = vmatpush.msra.mxu0 %v610
        %1271 = vmatpush.msra.mxu0 %v608
        %1272 = vmatpush.msra.mxu0 %v606
        %1273 = vmatpush.msra.mxu0 %v604
        %1274 = vmatpush.msra.mxu0 %v602
        %1275 = vmatpush.msra.mxu0 %v600
        %1276 = vmatmul.f32.gmra.mxu0 %v440
        %v1277 = vpop.f32.mrf.mxu0
        %v1278 = vadd.f32 %v1165, %v1277
        %1279 = vmatmul.f32.gmra.mxu0 %v444
        %v1280 = vpop.f32.mrf.mxu0
        %v1281 = vadd.f32 %v1168, %v1280
        %1282 = vmatmul.f32.gmra.mxu0 %v448
        %v1283 = vpop.f32.mrf.mxu0
        %v1284 = vadd.f32 %v1171, %v1283
        %1285 = vmatmul.f32.gmra.mxu0 %v452
        %v1286 = vpop.f32.mrf.mxu0
        %v1287 = vadd.f32 %v1174, %v1286
        %1288 = vmatmul.f32.gmra.mxu0 %v456
        %v1289 = vpop.f32.mrf.mxu0
        %v1290 = vadd.f32 %v1177, %v1289
        %1291 = vmatmul.f32.gmra.mxu0 %v460
        %v1292 = vpop.f32.mrf.mxu0
        %v1293 = vadd.f32 %v1180, %v1292
        %1294 = vmatmul.f32.gmra.mxu0 %v464
        %v1295 = vpop.f32.mrf.mxu0
        %v1296 = vadd.f32 %v1183, %v1295
        %1297 = vmatmul.f32.gmra.mxu0 %v468
        %v1298 = vpop.f32.mrf.mxu0
        %v1299 = vadd.f32 %v1186, %v1298
        %1300 = vmatmul.f32.gmra.mxu0 %v472
        %v1301 = vpop.f32.mrf.mxu0
        %v1302 = vadd.f32 %v1189, %v1301
        %1303 = vmatmul.f32.gmra.mxu0 %v476
        %v1304 = vpop.f32.mrf.mxu0
        %v1305 = vadd.f32 %v1192, %v1304
        %1306 = vmatmul.f32.gmra.mxu0 %v480
        %v1307 = vpop.f32.mrf.mxu0
        %v1308 = vadd.f32 %v1195, %v1307
        %1309 = vmatmul.f32.gmra.mxu0 %v484
        %v1310 = vpop.f32.mrf.mxu0
        %v1311 = vadd.f32 %v1198, %v1310
        %1312 = vmatmul.f32.gmra.mxu0 %v488
        %v1313 = vpop.f32.mrf.mxu0
        %v1314 = vadd.f32 %v1201, %v1313
        %1315 = vmatmul.f32.gmra.mxu0 %v492
        %v1316 = vpop.f32.mrf.mxu0
        %v1317 = vadd.f32 %v1204, %v1316
        %1318 = vmatmul.f32.gmra.mxu0 %v496
        %v1319 = vpop.f32.mrf.mxu0
        %v1320 = vadd.f32 %v1207, %v1319
        %1321 = vmatmul.f32.gmra.mxu0 %v500
        %v1322 = vpop.f32.mrf.mxu0
        %v1323 = vadd.f32 %v1210, %v1322
        %1324 = vmatmul.f32.gmra.mxu0 %v504
        %v1325 = vpop.f32.mrf.mxu0
        %v1326 = vadd.f32 %v1213, %v1325
        %1327 = vmatmul.f32.gmra.mxu0 %v508
        %v1328 = vpop.f32.mrf.mxu0
        %v1329 = vadd.f32 %v1216, %v1328
        %1330 = vmatmul.f32.gmra.mxu0 %v512
        %v1331 = vpop.f32.mrf.mxu0
        %v1332 = vadd.f32 %v1219, %v1331
        %1333 = vmatmul.f32.gmra.mxu0 %v516
        %v1334 = vpop.f32.mrf.mxu0
        %v1335 = vadd.f32 %v1222, %v1334
        %1336 = vmatmul.f32.gmra.mxu0 %v520
        %v1337 = vpop.f32.mrf.mxu0
        %v1338 = vadd.f32 %v1225, %v1337
        %1339 = vmatmul.f32.gmra.mxu0 %v524
        %v1340 = vpop.f32.mrf.mxu0
        %v1341 = vadd.f32 %v1228, %v1340
        %1342 = vmatmul.f32.gmra.mxu0 %v528
        %v1343 = vpop.f32.mrf.mxu0
        %v1344 = vadd.f32 %v1231, %v1343
        %1345 = vmatmul.f32.gmra.mxu0 %v532
        %v1346 = vpop.f32.mrf.mxu0
        %v1347 = vadd.f32 %v1234, %v1346
        %1348 = vmatmul.f32.gmra.mxu0 %v536
        %v1349 = vpop.f32.mrf.mxu0
        %v1350 = vadd.f32 %v1237, %v1349
        %1351 = vmatmul.f32.gmra.mxu0 %v540
        %v1352 = vpop.f32.mrf.mxu0
        %v1353 = vadd.f32 %v1240, %v1352
        %1354 = vmatmul.f32.gmra.mxu0 %v544
        %v1355 = vpop.f32.mrf.mxu0
        %v1356 = vadd.f32 %v1243, %v1355
        %1357 = vmatmul.f32.gmra.mxu0 %v548
        %v1358 = vpop.f32.mrf.mxu0
        %v1359 = vadd.f32 %v1246, %v1358
        %1360 = vmatmul.f32.gmra.mxu0 %v552
        %v1361 = vpop.f32.mrf.mxu0
        %v1362 = vadd.f32 %v1249, %v1361
        %1363 = vmatmul.f32.gmra.mxu0 %v556
        %v1364 = vpop.f32.mrf.mxu0
        %v1365 = vadd.f32 %v1252, %v1364
        %1366 = vmatmul.f32.gmra.mxu0 %v560
        %v1367 = vpop.f32.mrf.mxu0
        %v1368 = vadd.f32 %v1255, %v1367
        %1369 = vmatmul.f32.gmra.mxu0 %v564
        %v1370 = vpop.f32.mrf.mxu0
        %v1371 = vadd.f32 %v1258, %v1370
        %1372 = vdwg.mxu0
        %1373 = vmatpush.msra.mxu0 %v662
        %1374 = vmatpush.msra.mxu0 %v660
        %1375 = vmatpush.msra.mxu0 %v658
        %1376 = vmatpush.msra.mxu0 %v656
        %1377 = vmatpush.msra.mxu0 %v654
        %1378 = vmatpush.msra.mxu0 %v652
        %1379 = vmatpush.msra.mxu0 %v650
        %1380 = vmatpush.msra.mxu0 %v648
        %1381 = vmatpush.msra.mxu0 %v646
        %1382 = vmatpush.msra.mxu0 %v644
        %1383 = vmatpush.msra.mxu0 %v642
        %1384 = vmatpush.msra.mxu0 %v640
        %1385 = vmatpush.msra.mxu0 %v638
        %1386 = vmatpush.msra.mxu0 %v636
        %1387 = vmatpush.msra.mxu0 %v634
        %1388 = vmatpush.msra.mxu0 %v632
        %1389 = vmatmul.f32.gmra.mxu0 %v441
        %v1390 = vpop.f32.mrf.mxu0
        %v1391 = vadd.f32 %v1278, %v1390
        %1392 = vmatmul.f32.gmra.mxu0 %v445
        %v1393 = vpop.f32.mrf.mxu0
        %v1394 = vadd.f32 %v1281, %v1393
        %1395 = vmatmul.f32.gmra.mxu0 %v449
        %v1396 = vpop.f32.mrf.mxu0
        %v1397 = vadd.f32 %v1284, %v1396
        %1398 = vmatmul.f32.gmra.mxu0 %v453
        %v1399 = vpop.f32.mrf.mxu0
        %v1400 = vadd.f32 %v1287, %v1399
        %1401 = vmatmul.f32.gmra.mxu0 %v457
        %v1402 = vpop.f32.mrf.mxu0
        %v1403 = vadd.f32 %v1290, %v1402
        %1404 = vmatmul.f32.gmra.mxu0 %v461
        %v1405 = vpop.f32.mrf.mxu0
        %v1406 = vadd.f32 %v1293, %v1405
        %1407 = vmatmul.f32.gmra.mxu0 %v465
        %v1408 = vpop.f32.mrf.mxu0
        %v1409 = vadd.f32 %v1296, %v1408
        %1410 = vmatmul.f32.gmra.mxu0 %v469
        %v1411 = vpop.f32.mrf.mxu0
        %v1412 = vadd.f32 %v1299, %v1411
        %1413 = vmatmul.f32.gmra.mxu0 %v473
        %v1414 = vpop.f32.mrf.mxu0
        %v1415 = vadd.f32 %v1302, %v1414
        %1416 = vmatmul.f32.gmra.mxu0 %v477
        %v1417 = vpop.f32.mrf.mxu0
        %v1418 = vadd.f32 %v1305, %v1417
        %1419 = vmatmul.f32.gmra.mxu0 %v481
        %v1420 = vpop.f32.mrf.mxu0
        %v1421 = vadd.f32 %v1308, %v1420
        %1422 = vmatmul.f32.gmra.mxu0 %v485
        %v1423 = vpop.f32.mrf.mxu0
        %v1424 = vadd.f32 %v1311, %v1423
        %1425 = vmatmul.f32.gmra.mxu0 %v489
        %v1426 = vpop.f32.mrf.mxu0
        %v1427 = vadd.f32 %v1314, %v1426
        %1428 = vmatmul.f32.gmra.mxu0 %v493
        %v1429 = vpop.f32.mrf.mxu0
        %v1430 = vadd.f32 %v1317, %v1429
        %1431 = vmatmul.f32.gmra.mxu0 %v497
        %v1432 = vpop.f32.mrf.mxu0
        %v1433 = vadd.f32 %v1320, %v1432
        %1434 = vmatmul.f32.gmra.mxu0 %v501
        %v1435 = vpop.f32.mrf.mxu0
        %v1436 = vadd.f32 %v1323, %v1435
        %1437 = vmatmul.f32.gmra.mxu0 %v505
        %v1438 = vpop.f32.mrf.mxu0
        %v1439 = vadd.f32 %v1326, %v1438
        %1440 = vmatmul.f32.gmra.mxu0 %v509
        %v1441 = vpop.f32.mrf.mxu0
        %v1442 = vadd.f32 %v1329, %v1441
        %1443 = vmatmul.f32.gmra.mxu0 %v513
        %v1444 = vpop.f32.mrf.mxu0
        %v1445 = vadd.f32 %v1332, %v1444
        %1446 = vmatmul.f32.gmra.mxu0 %v517
        %v1447 = vpop.f32.mrf.mxu0
        %v1448 = vadd.f32 %v1335, %v1447
        %1449 = vmatmul.f32.gmra.mxu0 %v521
        %v1450 = vpop.f32.mrf.mxu0
        %v1451 = vadd.f32 %v1338, %v1450
        %1452 = vmatmul.f32.gmra.mxu0 %v525
        %v1453 = vpop.f32.mrf.mxu0
        %v1454 = vadd.f32 %v1341, %v1453
        %1455 = vmatmul.f32.gmra.mxu0 %v529
        %v1456 = vpop.f32.mrf.mxu0
        %v1457 = vadd.f32 %v1344, %v1456
        %1458 = vmatmul.f32.gmra.mxu0 %v533
        %v1459 = vpop.f32.mrf.mxu0
        %v1460 = vadd.f32 %v1347, %v1459
        %1461 = vmatmul.f32.gmra.mxu0 %v537
        %v1462 = vpop.f32.mrf.mxu0
        %v1463 = vadd.f32 %v1350, %v1462
        %1464 = vmatmul.f32.gmra.mxu0 %v541
        %v1465 = vpop.f32.mrf.mxu0
        %v1466 = vadd.f32 %v1353, %v1465
        %1467 = vmatmul.f32.gmra.mxu0 %v545
        %v1468 = vpop.f32.mrf.mxu0
        %v1469 = vadd.f32 %v1356, %v1468
        %1470 = vmatmul.f32.gmra.mxu0 %v549
        %v1471 = vpop.f32.mrf.mxu0
        %v1472 = vadd.f32 %v1359, %v1471
        %1473 = vmatmul.f32.gmra.mxu0 %v553
        %v1474 = vpop.f32.mrf.mxu0
        %v1475 = vadd.f32 %v1362, %v1474
        %1476 = vmatmul.f32.gmra.mxu0 %v557
        %v1477 = vpop.f32.mrf.mxu0
        %v1478 = vadd.f32 %v1365, %v1477
        %1479 = vmatmul.f32.gmra.mxu0 %v561
        %v1480 = vpop.f32.mrf.mxu0
        %v1481 = vadd.f32 %v1368, %v1480
        %1482 = vmatmul.f32.gmra.mxu0 %v565
        %v1483 = vpop.f32.mrf.mxu0
        %v1484 = vadd.f32 %v1371, %v1483
        %1485 = vdwg.mxu0
        %1486 = vmatpush.msra.mxu0 %v694
        %1487 = vmatpush.msra.mxu0 %v692
        %1488 = vmatpush.msra.mxu0 %v690
        %1489 = vmatpush.msra.mxu0 %v688
        %1490 = vmatpush.msra.mxu0 %v686
        %1491 = vmatpush.msra.mxu0 %v684
        %1492 = vmatpush.msra.mxu0 %v682
        %1493 = vmatpush.msra.mxu0 %v680
        %1494 = vmatpush.msra.mxu0 %v678
        %1495 = vmatpush.msra.mxu0 %v676
        %1496 = vmatpush.msra.mxu0 %v674
        %1497 = vmatpush.msra.mxu0 %v672
        %1498 = vmatpush.msra.mxu0 %v670
        %1499 = vmatpush.msra.mxu0 %v668
        %1500 = vmatpush.msra.mxu0 %v666
        %1501 = vmatpush.msra.mxu0 %v664
        %1502 = vmatmul.f32.gmra.mxu0 %v442
        %v1503 = vpop.f32.mrf.mxu0
        %v1504 = vadd.f32 %v1391, %v1503
        %1505 = vmatmul.f32.gmra.mxu0 %v446
        %v1506 = vpop.f32.mrf.mxu0
        %v1507 = vadd.f32 %v1394, %v1506
        %1508 = vmatmul.f32.gmra.mxu0 %v450
        %v1509 = vpop.f32.mrf.mxu0
        %v1510 = vadd.f32 %v1397, %v1509
        %1511 = vmatmul.f32.gmra.mxu0 %v454
        %v1512 = vpop.f32.mrf.mxu0
        %v1513 = vadd.f32 %v1400, %v1512
        %1514 = vmatmul.f32.gmra.mxu0 %v458
        %v1515 = vpop.f32.mrf.mxu0
        %v1516 = vadd.f32 %v1403, %v1515
        %1517 = vmatmul.f32.gmra.mxu0 %v462
        %v1518 = vpop.f32.mrf.mxu0
        %v1519 = vadd.f32 %v1406, %v1518
        %1520 = vmatmul.f32.gmra.mxu0 %v466
        %v1521 = vpop.f32.mrf.mxu0
        %v1522 = vadd.f32 %v1409, %v1521
        %1523 = vmatmul.f32.gmra.mxu0 %v470
        %v1524 = vpop.f32.mrf.mxu0
        %v1525 = vadd.f32 %v1412, %v1524
        %1526 = vmatmul.f32.gmra.mxu0 %v474
        %v1527 = vpop.f32.mrf.mxu0
        %v1528 = vadd.f32 %v1415, %v1527
        %1529 = vmatmul.f32.gmra.mxu0 %v478
        %v1530 = vpop.f32.mrf.mxu0
        %v1531 = vadd.f32 %v1418, %v1530
        %1532 = vmatmul.f32.gmra.mxu0 %v482
        %v1533 = vpop.f32.mrf.mxu0
        %v1534 = vadd.f32 %v1421, %v1533
        %1535 = vmatmul.f32.gmra.mxu0 %v486
        %v1536 = vpop.f32.mrf.mxu0
        %v1537 = vadd.f32 %v1424, %v1536
        %1538 = vmatmul.f32.gmra.mxu0 %v490
        %v1539 = vpop.f32.mrf.mxu0
        %v1540 = vadd.f32 %v1427, %v1539
        %1541 = vmatmul.f32.gmra.mxu0 %v494
        %v1542 = vpop.f32.mrf.mxu0
        %v1543 = vadd.f32 %v1430, %v1542
        %1544 = vmatmul.f32.gmra.mxu0 %v498
        %v1545 = vpop.f32.mrf.mxu0
        %v1546 = vadd.f32 %v1433, %v1545
        %1547 = vmatmul.f32.gmra.mxu0 %v502
        %v1548 = vpop.f32.mrf.mxu0
        %v1549 = vadd.f32 %v1436, %v1548
        %1550 = vmatmul.f32.gmra.mxu0 %v506
        %v1551 = vpop.f32.mrf.mxu0
        %v1552 = vadd.f32 %v1439, %v1551
        %1553 = vmatmul.f32.gmra.mxu0 %v510
        %v1554 = vpop.f32.mrf.mxu0
        %v1555 = vadd.f32 %v1442, %v1554
        %1556 = vmatmul.f32.gmra.mxu0 %v514
        %v1557 = vpop.f32.mrf.mxu0
        %v1558 = vadd.f32 %v1445, %v1557
        %1559 = vmatmul.f32.gmra.mxu0 %v518
        %v1560 = vpop.f32.mrf.mxu0
        %v1561 = vadd.f32 %v1448, %v1560
        %1562 = vmatmul.f32.gmra.mxu0 %v522
        %v1563 = vpop.f32.mrf.mxu0
        %v1564 = vadd.f32 %v1451, %v1563
        %1565 = vmatmul.f32.gmra.mxu0 %v526
        %v1566 = vpop.f32.mrf.mxu0
        %v1567 = vadd.f32 %v1454, %v1566
        %1568 = vmatmul.f32.gmra.mxu0 %v530
        %v1569 = vpop.f32.mrf.mxu0
        %v1570 = vadd.f32 %v1457, %v1569
        %1571 = vmatmul.f32.gmra.mxu0 %v534
        %v1572 = vpop.f32.mrf.mxu0
        %v1573 = vadd.f32 %v1460, %v1572
        %1574 = vmatmul.f32.gmra.mxu0 %v538
        %v1575 = vpop.f32.mrf.mxu0
        %v1576 = vadd.f32 %v1463, %v1575
        %1577 = vmatmul.f32.gmra.mxu0 %v542
        %v1578 = vpop.f32.mrf.mxu0
        %v1579 = vadd.f32 %v1466, %v1578
        %1580 = vmatmul.f32.gmra.mxu0 %v546
        %v1581 = vpop.f32.mrf.mxu0
        %v1582 = vadd.f32 %v1469, %v1581
        %1583 = vmatmul.f32.gmra.mxu0 %v550
        %v1584 = vpop.f32.mrf.mxu0
        %v1585 = vadd.f32 %v1472, %v1584
        %1586 = vmatmul.f32.gmra.mxu0 %v554
        %v1587 = vpop.f32.mrf.mxu0
        %v1588 = vadd.f32 %v1475, %v1587
        %1589 = vmatmul.f32.gmra.mxu0 %v558
        %v1590 = vpop.f32.mrf.mxu0
        %v1591 = vadd.f32 %v1478, %v1590
        %1592 = vmatmul.f32.gmra.mxu0 %v562
        %v1593 = vpop.f32.mrf.mxu0
        %v1594 = vadd.f32 %v1481, %v1593
        %1595 = vmatmul.f32.gmra.mxu0 %v566
        %v1596 = vpop.f32.mrf.mxu0
        %v1597 = vadd.f32 %v1484, %v1596
        %1598 = vdwg.mxu0
        %v1599 = vadd.f32 %v375, %v1052
        %v1600 = vadd.f32 %v376, %v1504
        %v1601 = vadd.f32 %v377, %v1055
        %v1602 = vadd.f32 %v378, %v1507
        %v1603 = vadd.f32 %v379, %v1058
        %v1604 = vadd.f32 %v380, %v1510
        %v1605 = vadd.f32 %v381, %v1061
        %v1606 = vadd.f32 %v382, %v1513
        %v1607 = vadd.f32 %v383, %v1064
        %v1608 = vadd.f32 %v384, %v1516
        %v1609 = vadd.f32 %v385, %v1067
        %v1610 = vadd.f32 %v386, %v1519
        %v1611 = vadd.f32 %v387, %v1070
        %v1612 = vadd.f32 %v388, %v1522
        %v1613 = vadd.f32 %v389, %v1073
        %v1614 = vadd.f32 %v390, %v1525
        %v1615 = vadd.f32 %v391, %v1076
        %v1616 = vadd.f32 %v392, %v1528
        %v1617 = vadd.f32 %v393, %v1079
        %v1618 = vadd.f32 %v394, %v1531
        %v1619 = vadd.f32 %v395, %v1082
        %v1620 = vadd.f32 %v396, %v1534
        %v1621 = vadd.f32 %v397, %v1085
        %v1622 = vadd.f32 %v398, %v1537
        %v1623 = vadd.f32 %v399, %v1088
        %v1624 = vadd.f32 %v400, %v1540
        %v1625 = vadd.f32 %v401, %v1091
        %v1626 = vadd.f32 %v402, %v1543
        %v1627 = vadd.f32 %v403, %v1094
        %v1628 = vadd.f32 %v404, %v1546
        %v1629 = vadd.f32 %v405, %v1097
        %v1630 = vadd.f32 %v406, %v1549
        %v1631 = vadd.f32 %v407, %v1100
        %v1632 = vadd.f32 %v408, %v1552
        %v1633 = vadd.f32 %v409, %v1103
        %v1634 = vadd.f32 %v410, %v1555
        %v1635 = vadd.f32 %v411, %v1106
        %v1636 = vadd.f32 %v412, %v1558
        %v1637 = vadd.f32 %v413, %v1109
        %v1638 = vadd.f32 %v414, %v1561
        %v1639 = vadd.f32 %v415, %v1112
        %v1640 = vadd.f32 %v416, %v1564
        %v1641 = vadd.f32 %v417, %v1115
        %v1642 = vadd.f32 %v418, %v1567
        %v1643 = vadd.f32 %v419, %v1118
        %v1644 = vadd.f32 %v420, %v1570
        %v1645 = vadd.f32 %v421, %v1121
        %v1646 = vadd.f32 %v422, %v1573
        %v1647 = vadd.f32 %v423, %v1124
        %v1648 = vadd.f32 %v424, %v1576
        %v1649 = vadd.f32 %v425, %v1127
        %v1650 = vadd.f32 %v426, %v1579
        %v1651 = vadd.f32 %v427, %v1130
        %v1652 = vadd.f32 %v428, %v1582
        %v1653 = vadd.f32 %v429, %v1133
        %v1654 = vadd.f32 %v430, %v1585
        %v1655 = vadd.f32 %v431, %v1136
        %v1656 = vadd.f32 %v432, %v1588
        %v1657 = vadd.f32 %v433, %v1139
        %v1658 = vadd.f32 %v434, %v1591
        %v1659 = vadd.f32 %v435, %v1142
        %v1660 = vadd.f32 %v436, %v1594
        %v1661 = vadd.f32 %v437, %v1145
        %v1662 = vadd.f32 %v438, %v1597
        %1663 = vst [vmem:[#allocation2] sm:$0xff] %v1599
        %1664 = vst [vmem:[#allocation2 + $0x8] sm:$0xff] %v1600
        %1665 = vst [vmem:[#allocation2 + $0x10] sm:$0xff] %v1601
        %1666 = vst [vmem:[#allocation2 + $0x18] sm:$0xff] %v1602
        %1667 = vst [vmem:[#allocation2 + $0x20] sm:$0xff] %v1603
        %1668 = vst [vmem:[#allocation2 + $0x28] sm:$0xff] %v1604
        %1669 = vst [vmem:[#allocation2 + $0x30] sm:$0xff] %v1605
        %1670 = vst [vmem:[#allocation2 + $0x38] sm:$0xff] %v1606
        %1671 = vst [vmem:[#allocation2 + $0x40] sm:$0xff] %v1607
        %1672 = vst [vmem:[#allocation2 + $0x48] sm:$0xff] %v1608
        %1673 = vst [vmem:[#allocation2 + $0x50] sm:$0xff] %v1609
        %1674 = vst [vmem:[#allocation2 + $0x58] sm:$0xff] %v1610
        %1675 = vst [vmem:[#allocation2 + $0x60] sm:$0xff] %v1611
        %1676 = vst [vmem:[#allocation2 + $0x68] sm:$0xff] %v1612
        %1677 = vst [vmem:[#allocation2 + $0x70] sm:$0xff] %v1613
        %1678 = vst [vmem:[#allocation2 + $0x78] sm:$0xff] %v1614
        %1679 = vst [vmem:[#allocation2 + $0x80] sm:$0xff] %v1615
        %1680 = vst [vmem:[#allocation2 + $0x88] sm:$0xff] %v1616
        %1681 = vst [vmem:[#allocation2 + $0x90] sm:$0xff] %v1617
        %1682 = vst [vmem:[#allocation2 + $0x98] sm:$0xff] %v1618
        %1683 = vst [vmem:[#allocation2 + $0xa0] sm:$0xff] %v1619
        %1684 = vst [vmem:[#allocation2 + $0xa8] sm:$0xff] %v1620
        %1685 = vst [vmem:[#allocation2 + $0xb0] sm:$0xff] %v1621
        %1686 = vst [vmem:[#allocation2 + $0xb8] sm:$0xff] %v1622
        %1687 = vst [vmem:[#allocation2 + $0xc0] sm:$0xff] %v1623
        %1688 = vst [vmem:[#allocation2 + $0xc8] sm:$0xff] %v1624
        %1689 = vst [vmem:[#allocation2 + $0xd0] sm:$0xff] %v1625
        %1690 = vst [vmem:[#allocation2 + $0xd8] sm:$0xff] %v1626
        %1691 = vst [vmem:[#allocation2 + $0xe0] sm:$0xff] %v1627
        %1692 = vst [vmem:[#allocation2 + $0xe8] sm:$0xff] %v1628
        %1693 = vst [vmem:[#allocation2 + $0xf0] sm:$0xff] %v1629
        %1694 = vst [vmem:[#allocation2 + $0xf8] sm:$0xff] %v1630
        %1695 = vst [vmem:[#allocation2 + $0x100] sm:$0xff] %v1631
        %1696 = vst [vmem:[#allocation2 + $0x108] sm:$0xff] %v1632
        %1697 = vst [vmem:[#allocation2 + $0x110] sm:$0xff] %v1633
        %1698 = vst [vmem:[#allocation2 + $0x118] sm:$0xff] %v1634
        %1699 = vst [vmem:[#allocation2 + $0x120] sm:$0xff] %v1635
        %1700 = vst [vmem:[#allocation2 + $0x128] sm:$0xff] %v1636
        %1701 = vst [vmem:[#allocation2 + $0x130] sm:$0xff] %v1637
        %1702 = vst [vmem:[#allocation2 + $0x138] sm:$0xff] %v1638
        %1703 = vst [vmem:[#allocation2 + $0x140] sm:$0xff] %v1639
        %1704 = vst [vmem:[#allocation2 + $0x148] sm:$0xff] %v1640
        %1705 = vst [vmem:[#allocation2 + $0x150] sm:$0xff] %v1641
        %1706 = vst [vmem:[#allocation2 + $0x158] sm:$0xff] %v1642
        %1707 = vst [vmem:[#allocation2 + $0x160] sm:$0xff] %v1643
        %1708 = vst [vmem:[#allocation2 + $0x168] sm:$0xff] %v1644
        %1709 = vst [vmem:[#allocation2 + $0x170] sm:$0xff] %v1645
        %1710 = vst [vmem:[#allocation2 + $0x178] sm:$0xff] %v1646
        %1711 = vst [vmem:[#allocation2 + $0x180] sm:$0xff] %v1647
        %1712 = vst [vmem:[#allocation2 + $0x188] sm:$0xff] %v1648
        %1713 = vst [vmem:[#allocation2 + $0x190] sm:$0xff] %v1649
        %1714 = vst [vmem:[#allocation2 + $0x198] sm:$0xff] %v1650
        %1715 = vst [vmem:[#allocation2 + $0x1a0] sm:$0xff] %v1651
        %1716 = vst [vmem:[#allocation2 + $0x1a8] sm:$0xff] %v1652
        %1717 = vst [vmem:[#allocation2 + $0x1b0] sm:$0xff] %v1653
        %1718 = vst [vmem:[#allocation2 + $0x1b8] sm:$0xff] %v1654
        %1719 = vst [vmem:[#allocation2 + $0x1c0] sm:$0xff] %v1655
        %1720 = vst [vmem:[#allocation2 + $0x1c8] sm:$0xff] %v1656
        %1721 = vst [vmem:[#allocation2 + $0x1d0] sm:$0xff] %v1657
        %1722 = vst [vmem:[#allocation2 + $0x1d8] sm:$0xff] %v1658
        %1723 = vst [vmem:[#allocation2 + $0x1e0] sm:$0xff] %v1659
        %1724 = vst [vmem:[#allocation2 + $0x1e8] sm:$0xff] %v1660
        %1725 = vst [vmem:[#allocation2 + $0x1f0] sm:$0xff] %v1661
        %1726 = vst [vmem:[#allocation2 + $0x1f8] sm:$0xff] %v1662
        // Predicated region
        $region49: #{tpu_custom_call.1} parent=31 // pred_check
          %p1727 = pneg %p307
        $region50: #{tpu_custom_call.1} parent=31 // pred_check_branch
          %1729 = sbr.rel (%p1727) target = $region52
        $region51: #{tpu_custom_call.1} parent=31 // pred_region
          %v1730 = vld [vmem:[#allocation2] sm:$0xff]
          %v1731 = vld [vmem:[#allocation2 + $0x8] sm:$0xff]
          %v1732 = vld [vmem:[#allocation2 + $0x10] sm:$0xff]
          %v1733 = vld [vmem:[#allocation2 + $0x18] sm:$0xff]
          %v1734 = vld [vmem:[#allocation2 + $0x20] sm:$0xff]
          %v1735 = vld [vmem:[#allocation2 + $0x28] sm:$0xff]
          %v1736 = vld [vmem:[#allocation2 + $0x30] sm:$0xff]
          %v1737 = vld [vmem:[#allocation2 + $0x38] sm:$0xff]
          %v1738 = vld [vmem:[#allocation2 + $0x40] sm:$0xff]
          %v1739 = vld [vmem:[#allocation2 + $0x48] sm:$0xff]
          %v1740 = vld [vmem:[#allocation2 + $0x50] sm:$0xff]
          %v1741 = vld [vmem:[#allocation2 + $0x58] sm:$0xff]
          %v1742 = vld [vmem:[#allocation2 + $0x60] sm:$0xff]
          %v1743 = vld [vmem:[#allocation2 + $0x68] sm:$0xff]
          %v1744 = vld [vmem:[#allocation2 + $0x70] sm:$0xff]
          %v1745 = vld [vmem:[#allocation2 + $0x78] sm:$0xff]
          %v1746 = vld [vmem:[#allocation2 + $0x80] sm:$0xff]
          %v1747 = vld [vmem:[#allocation2 + $0x88] sm:$0xff]
          %v1748 = vld [vmem:[#allocation2 + $0x90] sm:$0xff]
          %v1749 = vld [vmem:[#allocation2 + $0x98] sm:$0xff]
          %v1750 = vld [vmem:[#allocation2 + $0xa0] sm:$0xff]
          %v1751 = vld [vmem:[#allocation2 + $0xa8] sm:$0xff]
          %v1752 = vld [vmem:[#allocation2 + $0xb0] sm:$0xff]
          %v1753 = vld [vmem:[#allocation2 + $0xb8] sm:$0xff]
          %v1754 = vld [vmem:[#allocation2 + $0xc0] sm:$0xff]
          %v1755 = vld [vmem:[#allocation2 + $0xc8] sm:$0xff]
          %v1756 = vld [vmem:[#allocation2 + $0xd0] sm:$0xff]
          %v1757 = vld [vmem:[#allocation2 + $0xd8] sm:$0xff]
          %v1758 = vld [vmem:[#allocation2 + $0xe0] sm:$0xff]
          %v1759 = vld [vmem:[#allocation2 + $0xe8] sm:$0xff]
          %v1760 = vld [vmem:[#allocation2 + $0xf0] sm:$0xff]
          %v1761 = vld [vmem:[#allocation2 + $0xf8] sm:$0xff]
          %v1762 = vld [vmem:[#allocation2 + $0x100] sm:$0xff]
          %v1763 = vld [vmem:[#allocation2 + $0x108] sm:$0xff]
          %v1764 = vld [vmem:[#allocation2 + $0x110] sm:$0xff]
          %v1765 = vld [vmem:[#allocation2 + $0x118] sm:$0xff]
          %v1766 = vld [vmem:[#allocation2 + $0x120] sm:$0xff]
          %v1767 = vld [vmem:[#allocation2 + $0x128] sm:$0xff]
          %v1768 = vld [vmem:[#allocation2 + $0x130] sm:$0xff]
          %v1769 = vld [vmem:[#allocation2 + $0x138] sm:$0xff]
          %v1770 = vld [vmem:[#allocation2 + $0x140] sm:$0xff]
          %v1771 = vld [vmem:[#allocation2 + $0x148] sm:$0xff]
          %v1772 = vld [vmem:[#allocation2 + $0x150] sm:$0xff]
          %v1773 = vld [vmem:[#allocation2 + $0x158] sm:$0xff]
          %v1774 = vld [vmem:[#allocation2 + $0x160] sm:$0xff]
          %v1775 = vld [vmem:[#allocation2 + $0x168] sm:$0xff]
          %v1776 = vld [vmem:[#allocation2 + $0x170] sm:$0xff]
          %v1777 = vld [vmem:[#allocation2 + $0x178] sm:$0xff]
          %v1778 = vld [vmem:[#allocation2 + $0x180] sm:$0xff]
          %v1779 = vld [vmem:[#allocation2 + $0x188] sm:$0xff]
          %v1780 = vld [vmem:[#allocation2 + $0x190] sm:$0xff]
          %v1781 = vld [vmem:[#allocation2 + $0x198] sm:$0xff]
          %v1782 = vld [vmem:[#allocation2 + $0x1a0] sm:$0xff]
          %v1783 = vld [vmem:[#allocation2 + $0x1a8] sm:$0xff]
          %v1784 = vld [vmem:[#allocation2 + $0x1b0] sm:$0xff]
          %v1785 = vld [vmem:[#allocation2 + $0x1b8] sm:$0xff]
          %v1786 = vld [vmem:[#allocation2 + $0x1c0] sm:$0xff]
          %v1787 = vld [vmem:[#allocation2 + $0x1c8] sm:$0xff]
          %v1788 = vld [vmem:[#allocation2 + $0x1d0] sm:$0xff]
          %v1789 = vld [vmem:[#allocation2 + $0x1d8] sm:$0xff]
          %v1790 = vld [vmem:[#allocation2 + $0x1e0] sm:$0xff]
          %v1791 = vld [vmem:[#allocation2 + $0x1e8] sm:$0xff]
          %v1792 = vld [vmem:[#allocation2 + $0x1f0] sm:$0xff]
          %v1793 = vld [vmem:[#allocation2 + $0x1f8] sm:$0xff]
          %v1794 = vld [vmem:[%s266] sm:$0x3]
          %v1796 = vperm.slane %v1794, 0
          %v1797 = vperm.slane %v1794, 1
          %v1800 = vadd.f32 %v1730, %v1796
          %v1801 = vadd.f32 %v1731, %v1797
          %v1802 = vadd.f32 %v1732, %v1796
          %v1803 = vadd.f32 %v1733, %v1797
          %v1804 = vadd.f32 %v1734, %v1796
          %v1805 = vadd.f32 %v1735, %v1797
          %v1806 = vadd.f32 %v1736, %v1796
          %v1807 = vadd.f32 %v1737, %v1797
          %v1808 = vadd.f32 %v1738, %v1796
          %v1809 = vadd.f32 %v1739, %v1797
          %v1810 = vadd.f32 %v1740, %v1796
          %v1811 = vadd.f32 %v1741, %v1797
          %v1812 = vadd.f32 %v1742, %v1796
          %v1813 = vadd.f32 %v1743, %v1797
          %v1814 = vadd.f32 %v1744, %v1796
          %v1815 = vadd.f32 %v1745, %v1797
          %v1816 = vadd.f32 %v1746, %v1796
          %v1817 = vadd.f32 %v1747, %v1797
          %v1818 = vadd.f32 %v1748, %v1796
          %v1819 = vadd.f32 %v1749, %v1797
          %v1820 = vadd.f32 %v1750, %v1796
          %v1821 = vadd.f32 %v1751, %v1797
          %v1822 = vadd.f32 %v1752, %v1796
          %v1823 = vadd.f32 %v1753, %v1797
          %v1824 = vadd.f32 %v1754, %v1796
          %v1825 = vadd.f32 %v1755, %v1797
          %v1826 = vadd.f32 %v1756, %v1796
          %v1827 = vadd.f32 %v1757, %v1797
          %v1828 = vadd.f32 %v1758, %v1796
          %v1829 = vadd.f32 %v1759, %v1797
          %v1830 = vadd.f32 %v1760, %v1796
          %v1831 = vadd.f32 %v1761, %v1797
          %v1832 = vadd.f32 %v1762, %v1796
          %v1833 = vadd.f32 %v1763, %v1797
          %v1834 = vadd.f32 %v1764, %v1796
          %v1835 = vadd.f32 %v1765, %v1797
          %v1836 = vadd.f32 %v1766, %v1796
          %v1837 = vadd.f32 %v1767, %v1797
          %v1838 = vadd.f32 %v1768, %v1796
          %v1839 = vadd.f32 %v1769, %v1797
          %v1840 = vadd.f32 %v1770, %v1796
          %v1841 = vadd.f32 %v1771, %v1797
          %v1842 = vadd.f32 %v1772, %v1796
          %v1843 = vadd.f32 %v1773, %v1797
          %v1844 = vadd.f32 %v1774, %v1796
          %v1845 = vadd.f32 %v1775, %v1797
          %v1846 = vadd.f32 %v1776, %v1796
          %v1847 = vadd.f32 %v1777, %v1797
          %v1848 = vadd.f32 %v1778, %v1796
          %v1849 = vadd.f32 %v1779, %v1797
          %v1850 = vadd.f32 %v1780, %v1796
          %v1851 = vadd.f32 %v1781, %v1797
          %v1852 = vadd.f32 %v1782, %v1796
          %v1853 = vadd.f32 %v1783, %v1797
          %v1854 = vadd.f32 %v1784, %v1796
          %v1855 = vadd.f32 %v1785, %v1797
          %v1856 = vadd.f32 %v1786, %v1796
          %v1857 = vadd.f32 %v1787, %v1797
          %v1858 = vadd.f32 %v1788, %v1796
          %v1859 = vadd.f32 %v1789, %v1797
          %v1860 = vadd.f32 %v1790, %v1796
          %v1861 = vadd.f32 %v1791, %v1797
          %v1862 = vadd.f32 %v1792, %v1796
          %v1863 = vadd.f32 %v1793, %v1797
          %1864 = vst [vmem:[%s299] sm:$0xff] %v1800
          %1865 = vst [vmem:[%s299 + $0x8] sm:$0xff] %v1801
          %1866 = vst [vmem:[%s299 + $0x10] sm:$0xff] %v1802
          %1867 = vst [vmem:[%s299 + $0x18] sm:$0xff] %v1803
          %1868 = vst [vmem:[%s299 + $0x20] sm:$0xff] %v1804
          %1869 = vst [vmem:[%s299 + $0x28] sm:$0xff] %v1805
          %1870 = vst [vmem:[%s299 + $0x30] sm:$0xff] %v1806
          %1871 = vst [vmem:[%s299 + $0x38] sm:$0xff] %v1807
          %1872 = vst [vmem:[%s299 + $0x40] sm:$0xff] %v1808
          %1873 = vst [vmem:[%s299 + $0x48] sm:$0xff] %v1809
          %1874 = vst [vmem:[%s299 + $0x50] sm:$0xff] %v1810
          %1875 = vst [vmem:[%s299 + $0x58] sm:$0xff] %v1811
          %1876 = vst [vmem:[%s299 + $0x60] sm:$0xff] %v1812
          %1877 = vst [vmem:[%s299 + $0x68] sm:$0xff] %v1813
          %1878 = vst [vmem:[%s299 + $0x70] sm:$0xff] %v1814
          %1879 = vst [vmem:[%s299 + $0x78] sm:$0xff] %v1815
          %1880 = vst [vmem:[%s299 + $0x80] sm:$0xff] %v1816
          %1881 = vst [vmem:[%s299 + $0x88] sm:$0xff] %v1817
          %1882 = vst [vmem:[%s299 + $0x90] sm:$0xff] %v1818
          %1883 = vst [vmem:[%s299 + $0x98] sm:$0xff] %v1819
          %1884 = vst [vmem:[%s299 + $0xa0] sm:$0xff] %v1820
          %1885 = vst [vmem:[%s299 + $0xa8] sm:$0xff] %v1821
          %1886 = vst [vmem:[%s299 + $0xb0] sm:$0xff] %v1822
          %1887 = vst [vmem:[%s299 + $0xb8] sm:$0xff] %v1823
          %1888 = vst [vmem:[%s299 + $0xc0] sm:$0xff] %v1824
          %1889 = vst [vmem:[%s299 + $0xc8] sm:$0xff] %v1825
          %1890 = vst [vmem:[%s299 + $0xd0] sm:$0xff] %v1826
          %1891 = vst [vmem:[%s299 + $0xd8] sm:$0xff] %v1827
          %1892 = vst [vmem:[%s299 + $0xe0] sm:$0xff] %v1828
          %1893 = vst [vmem:[%s299 + $0xe8] sm:$0xff] %v1829
          %1894 = vst [vmem:[%s299 + $0xf0] sm:$0xff] %v1830
          %1895 = vst [vmem:[%s299 + $0xf8] sm:$0xff] %v1831
          %1896 = vst [vmem:[%s299 + $0x100] sm:$0xff] %v1832
          %1897 = vst [vmem:[%s299 + $0x108] sm:$0xff] %v1833
          %1898 = vst [vmem:[%s299 + $0x110] sm:$0xff] %v1834
          %1899 = vst [vmem:[%s299 + $0x118] sm:$0xff] %v1835
          %1900 = vst [vmem:[%s299 + $0x120] sm:$0xff] %v1836
          %1901 = vst [vmem:[%s299 + $0x128] sm:$0xff] %v1837
          %1902 = vst [vmem:[%s299 + $0x130] sm:$0xff] %v1838
          %1903 = vst [vmem:[%s299 + $0x138] sm:$0xff] %v1839
          %1904 = vst [vmem:[%s299 + $0x140] sm:$0xff] %v1840
          %1905 = vst [vmem:[%s299 + $0x148] sm:$0xff] %v1841
          %1906 = vst [vmem:[%s299 + $0x150] sm:$0xff] %v1842
          %1907 = vst [vmem:[%s299 + $0x158] sm:$0xff] %v1843
          %1908 = vst [vmem:[%s299 + $0x160] sm:$0xff] %v1844
          %1909 = vst [vmem:[%s299 + $0x168] sm:$0xff] %v1845
          %1910 = vst [vmem:[%s299 + $0x170] sm:$0xff] %v1846
          %1911 = vst [vmem:[%s299 + $0x178] sm:$0xff] %v1847
          %1912 = vst [vmem:[%s299 + $0x180] sm:$0xff] %v1848
          %1913 = vst [vmem:[%s299 + $0x188] sm:$0xff] %v1849
          %1914 = vst [vmem:[%s299 + $0x190] sm:$0xff] %v1850
          %1915 = vst [vmem:[%s299 + $0x198] sm:$0xff] %v1851
          %1916 = vst [vmem:[%s299 + $0x1a0] sm:$0xff] %v1852
          %1917 = vst [vmem:[%s299 + $0x1a8] sm:$0xff] %v1853
          %1918 = vst [vmem:[%s299 + $0x1b0] sm:$0xff] %v1854
          %1919 = vst [vmem:[%s299 + $0x1b8] sm:$0xff] %v1855
          %1920 = vst [vmem:[%s299 + $0x1c0] sm:$0xff] %v1856
          %1921 = vst [vmem:[%s299 + $0x1c8] sm:$0xff] %v1857
          %1922 = vst [vmem:[%s299 + $0x1d0] sm:$0xff] %v1858
          %1923 = vst [vmem:[%s299 + $0x1d8] sm:$0xff] %v1859
          %1924 = vst [vmem:[%s299 + $0x1e0] sm:$0xff] %v1860
          %1925 = vst [vmem:[%s299 + $0x1e8] sm:$0xff] %v1861
          %1926 = vst [vmem:[%s299 + $0x1f0] sm:$0xff] %v1862
          %1927 = vst [vmem:[%s299 + $0x1f8] sm:$0xff] %v1863
        $region52: #{tpu_custom_call.1} parent=31 // pred_fallthru
          _
        %s1928 = sand.u32 %s134, 1
        %s1929 = scalar_lea.sflag [#allocation5], %s1928
        %s1930 = sand.u32 %s134, 1
        %s1931 = smul.addr %s1930, 512
        %s1932 = scalar_lea.vmem [#allocation9], %s1931
        // Predicated region
        $region53: #{tpu_custom_call.1} parent=31 // pred_check
          %p1933 = pneg %p144
        $region54: #{tpu_custom_call.1} parent=31 // pred_check_branch
          %1935 = sbr.rel (%p1933) target = $region56
        $region55: #{tpu_custom_call.1} parent=31 // pred_region
          %s1936 = smul.u32 32, %s28
          %s1937 = smul.u32 2, %s29
          %1939 = vsyncadd %s1929, 0
          %s1940 = smul.addr %s1936, 8
          %s1941 = sadd.s32 %s1937, %s1940
          %s1942 = smul.addr %s1941, 8
          %s1943 = scalar_lea.hbm %s3, %s1942
          %s1944 = sshll.u32 %s1932, 4
          %s1945 = int_to_ptr.vmem [resolvable:$true] %s1944
          %s1946 = sshll.u32 %s1943, 4
          %s1947 = int_to_ptr.hbm [resolvable:$true] %s1946
          %1952 = dma.vmem_to_hbm [thread:$0]  %s1945, 8192, %s1947, %s1929, 256, 1024, 16
        $region56: #{tpu_custom_call.1} parent=31 // pred_fallthru
          _
      $region32: #{tpu_custom_call.1} parent=5 // pred_fallthru
        _
      %p1953 = scmp.le.s32.totalorder 2, %s18
      // Predicated region
      $region57: #{tpu_custom_call.1} parent=5 // pred_check
        %p1954 = pneg %p1953
      $region58: #{tpu_custom_call.1} parent=5 // pred_check_branch
        %1956 = sbr.rel (%p1954) target = $region60
      $region59: #{tpu_custom_call.1} parent=5 // pred_region
        %s1957 = ssub.s32 %s18, 2
        // Predicated region
        $region61: #{tpu_custom_call.1} parent=59 // pred_check
          %p1958 = pneg %p150
        $region62: #{tpu_custom_call.1} parent=59 // pred_check_branch
          %1960 = sbr.rel (%p1958) target = $region64
        $region63: #{tpu_custom_call.1} parent=59 // pred_region
          %s1961 = sand.u32 %s135, 1
          %s1962 = scalar_lea.sflag [#allocation5], %s1961
          %s1963 = sand.u32 %s135, 1
          %s1964 = smul.addr %s1963, 512
          %s1965 = scalar_lea.vmem [#allocation9], %s1964
          %1967 = dma.done %s1962, 8192
        $region64: #{tpu_custom_call.1} parent=59 // pred_fallthru
          _
      $region60: #{tpu_custom_call.1} parent=5 // pred_fallthru
        _
    $region6: #{tpu_custom_call.1} parent=1 // loop_footer
      %s22 = sadd.s32 1, %s18
    $region7: #{tpu_custom_call.1} parent=1 // loop_footer_branch
      %17 = sbr.rel target = $region3
    $region8: #{tpu_custom_call.1} parent=1 // loop_exit
      _
    %1968 = vsyncpa [#allocation4], 1
    %s1969 = scalar_lea.sflag [#allocation4], 1
    %1970 = vsyncpa %s1969, 1
    %1971 = vsyncpa [#allocation7], 1
    %s1972 = scalar_lea.sflag [#allocation7], 1
    %1973 = vsyncpa %s1972, 1
    %1974 = vsyncpa [#allocation5], 1
    %s1975 = scalar_lea.sflag [#allocation5], 1
    %1976 = vsyncpa %s1975, 1

</llo_original>
